<compile_context>
chip_gen: v6e
topology: v6e:2x2x1
jax: 0.10.0
libtpu: 0.0.40
codegen_flags: <defaults>
</compile_context>

<pallas_src>
import functools

import jax
import jax.numpy as jnp
from jax import lax
from jax.experimental import pallas as pl
from jax.experimental.pallas import tpu as pltpu

ALPHA = 0.1
INV_ALPHA = 1.0 / ALPHA

_VMEM_BUDGET = 28 * 1024 * 1024   # working-set target: well inside v7x's 64 MiB VMEM
_VMEM_LIMIT = 48 * 1024 * 1024    # scoped-vmem limit requested only when needed


def _round_up(x, d):
    return ((x + d - 1) // d) * d


def _celu(x):
    """CELU(alpha=0.1) with an expm1-accurate negative branch.

    Avoids relying on an expm1 lowering: Taylor expansion for |a| small (rel err
    ~3e-6), exp(a)-1 otherwise.  Argument clamped so the unselected branch never
    produces inf.
    """
    a = jnp.minimum(x, 0.0) * INV_ALPHA            # a <= 0
    direct = jnp.exp(a) - 1.0
    taylor = a * (1.0 + a * (0.5 + a * (1.0 / 6.0)))
    em1 = jnp.where(a > -0.04, taylor, direct)     # ~ expm1(a)
    return jnp.where(x > 0.0, x, ALPHA * em1)


def _bmm_mlp_kernel(num_hidden, mxu_dtype, x_ref, *refs):
    """Fused-ensemble MLP on one tile of atoms, lane-dense transposed layout.

    x_ref : (tile_atoms, m)  raw feature block, atoms on sublanes
    refs  : (W0, b0, W1, b1, ..., Wf, bf, o_ref)
      W_l : (out_l, in_l)  fused (stacked / block-diagonal) weights (mxu dtype)
      b_l : (out_l, 1)     fused biases (f32)
      o_ref: (p_final, tile_atoms)  ensemble-mean output, lane dense
    """
    o_ref = refs[-1]
    wb = refs[:-1]
    x = x_ref[...].astype(mxu_dtype)               # (tile, m)

    def first_dot(w):
        # Contract over the last dim of BOTH operands (w0 @ x^T): no host- or
        # kernel-side transpose of the feature block; the result (out0, tile)
        # is already in the transposed, lane-dense layout.
        return lax.dot_general(
            w, x, dimension_numbers=(((1,), (1,)), ((), ())),
            preferred_element_type=jnp.float32)

    if num_hidden == 0:
        y = first_dot(wb[0][...]) + wb[1][...]
    else:
        h = _celu(first_dot(wb[0][...]) + wb[1][...]).astype(mxu_dtype)
        for l in range(1, num_hidden):             # static unroll over layers
            w = wb[2 * l][...]
            b = wb[2 * l + 1][...]                 # (out_l, 1) -> lane broadcast
            z = jnp.dot(w, h, preferred_element_type=jnp.float32) + b
            h = _celu(z).astype(mxu_dtype)
        wf = wb[2 * num_hidden][...]               # already scaled by 1/E
        bf = wb[2 * num_hidden + 1][...]           # mean of final biases
        y = jnp.dot(wf, h, preferred_element_type=jnp.float32) + bf
    o_ref[...] = y.astype(o_ref.dtype)


def _pack_params(weights, biases, mxu_dtype):
    """Fuse the ensemble axis into the feature axis ((out, in) layout).

    weights[l]: (E, m_l, p_l)  -- BmmLinear layout (in x out)
    biases[l] : (E, 1, p_l)
    """
    E = weights[0].shape[0]
    num_hidden = len(weights) - 1
    pw, pb = [], []
    for l in range(num_hidden):
        wl = weights[l].astype(jnp.float32)
        if l == 0:
            # Input shared across the ensemble -> stack output rows.
            pw.append(jnp.concatenate([wl[e].T for e in range(E)], axis=0))
        else:
            # Independent per-ensemble features -> block-diagonal weight.
            # TODO(synk): for large ensembles (E~8, h~128-160) switch to a
            # per-ensemble unrolled dot loop instead of block_diag (E x less
            # weight VMEM / MACs); block-diag is the right call at ANI sizes.
            pw.append(jax.scipy.linalg.block_diag(*[wl[e].T for e in range(E)]))
        pb.append(jnp.concatenate(
            [biases[l][e].astype(jnp.float32).T for e in range(E)], axis=0))
    # Final layer + ensemble mean folded together.
    wfT = [weights[-1][e].astype(jnp.float32).T / E for e in range(E)]
    if num_hidden == 0:
        pw.append(sum(wfT))                        # shared input -> mean weight
    else:
        pw.append(jnp.concatenate(wfT, axis=1))    # (p, E*m_f)
    pb.append(jnp.mean(biases[-1].astype(jnp.float32), axis=0).T)   # (p, 1)
    pw = [w.astype(mxu_dtype) for w in pw]
    return pw, pb


def _choose_tile_atoms(n, requested, per_atom_bytes, const_bytes, budget):
    """Multiple of 128, VMEM-budgeted, with an even step count for v7x megacore."""
    n128 = _round_up(max(n, 1), 128)
    avail = max(budget - const_bytes, per_atom_bytes * 128)
    cap = max(128, (avail // per_atom_bytes) // 128 * 128)
    tile = max(128, min(_round_up(requested, 128), cap, n128))
    steps = -(-n128 // tile)
    if n128 >= 256 and steps % 2 == 1:
        # Keep the "parallel" atom grid even so both v7x TensorCores get the
        # same number of tiles (one extra cheap step on single-TC v5e/v6e).
        steps += 1
        tile = max(128, _round_up(-(-n128 // steps), 128))
    return tile


def _const_block_spec(shape, single_buffer):
    """Full-array block with a constant index_map; single-buffered when supported."""
    index_map = lambda i: (0,) * len(shape)
    if single_buffer:
        try:
            return pl.BlockSpec(shape, index_map, pipeline_mode=pl.Buffered(1))
        except (TypeError, AttributeError):
            pass
    return pl.BlockSpec(shape, index_map)


def bmm_atomic_network(features, weights, biases, *, tile_atoms=4096,
                       use_bf16_mxu=False):
    """features: (n_atoms, m); weights[l]: (E, m_l, p_l); biases[l]: (E, 1, p_l).

    Returns the ensemble mean of the final BmmLinear, shape (n_atoms, p_final),
    matching BmmAtomicNetwork.forward (hidden layers use CELU(alpha=0.1)).
    Set use_bf16_mxu=True on v6e/v7x for bf16 MXU inputs (f32 accumulation).
    """
    n, m = features.shape
    mxu_dtype = jnp.bfloat16 if use_bf16_mxu else jnp.float32
    packed_w, packed_b = _pack_params(weights, biases, mxu_dtype)
    num_hidden = len(packed_w) - 1
    p_f = packed_w[-1].shape[0]

    # --- VMEM working-set estimate drives the atom-tile size -----------------
    widths = [w.shape[0] for w in packed_w]
    in_widths = [m] + widths[:-1]
    max_pair = max(i + o for i, o in zip(in_widths, widths))
    in_bytes = jnp.dtype(features.dtype).itemsize
    per_atom = (2 * _round_up(m, 128) * in_bytes      # double-buffered input blocks
                + m * 4                               # relayout slack for the MXU feed
                + max_pair * 4                        # two live f32 activation layers
                + 2 * _round_up(p_f, 8) * 4)          # double-buffered output blocks
    const_bytes = (
        2 * sum(_round_up(w.shape[0], 8) * _round_up(w.shape[1], 128) * w.dtype.itemsize
                for w in packed_w)
        + 2 * sum(_round_up(b.shape[0], 8) * 128 * 4 for b in packed_b))

    tile = _choose_tile_atoms(n, tile_atoms, per_atom, const_bytes, _VMEM_BUDGET)
    grid = (pl.cdiv(n, tile),)
    est_bytes = const_bytes + per_atom * tile
    vmem_limit = _VMEM_LIMIT if est_bytes > 12 * 1024 * 1024 else None

    kernel = functools.partial(_bmm_mlp_kernel, num_hidden, mxu_dtype)

    def call(single_buffer_consts):
        # Raw (n, m) features: no host-side transpose or pad; ragged last tile
        # is handled by Pallas' clipped boundary DMAs.
        in_specs = [pl.BlockSpec((tile, m), lambda i: (i, 0))]
        inputs = [features]
        for w, b in zip(packed_w, packed_b):
            in_specs.append(_const_block_spec(tuple(w.shape), single_buffer_consts))
            in_specs.append(_const_block_spec(tuple(b.shape), single_buffer_consts))
            inputs.extend([w, b])
        return pl.pallas_call(
            kernel,
            out_shape=jax.ShapeDtypeStruct((p_f, n), features.dtype),
            grid=grid,
            in_specs=in_specs,
            out_specs=pl.BlockSpec((p_f, tile), lambda i: (0, i)),
            compiler_params=pltpu.CompilerParams(
                dimension_semantics=("parallel",),
                vmem_limit_bytes=vmem_limit),
        )(*inputs)

    try:
        outT = call(True)        # grid-invariant weights/biases single-buffered
    except Exception:            # older jax without pipeline_mode / Buffered(1)
        outT = call(False)

    if p_f == 1:
        return outT.reshape(n, 1)        # pure reshape, no output relayout pass
    return outT.T


def reference(features, weights, biases):
    """Pure-JAX reference mirroring BmmAtomicNetwork.forward semantics."""
    ensemble = weights[0].shape[0]
    x = jnp.broadcast_to(features[None], (ensemble,) + features.shape).astype(jnp.float32)
    for w, b in zip(weights[:-1], biases[:-1]):
        z = jnp.einsum("enm,emp->enp", x, w) + b
        x = jnp.where(z > 0, z, ALPHA * jnp.expm1(jnp.minimum(z, 0.0) * INV_ALPHA))
    x = jnp.einsum("enm,emp->enp", x, weights[-1]) + biases[-1]
    return x.mean(0)


if __name__ == "__main__":
    key = jax.random.PRNGKey(0)

    # Small, ANI-like shapes: ensemble of 4 networks, MLP 32 -> 32 -> 16 -> 1.
    E = 4
    dims = [32, 32, 16]     # in_features + hidden sizes
    final_out = 1

    keys = jax.random.split(key, len(dims) + 2)
    weights, biases = [], []
    layer_dims = list(zip(dims[:-1], dims[1:])) + [(dims[-1], final_out)]
    for idx, (m_l, p_l) in enumerate(layer_dims):
        wkey, bkey = jax.random.split(keys[idx + 1])
        scale = 1.0 / jnp.sqrt(jnp.float32(m_l))
        weights.append(jax.random.normal(wkey, (E, m_l, p_l), dtype=jnp.float32) * scale)
        biases.append(jax.random.normal(bkey, (E, 1, p_l), dtype=jnp.float32) * 0.1)

    features = None
    ref = None
    for n_atoms in (250, 1000):   # not multiples of 128: exercises ragged last tile
        fkey = jax.random.fold_in(keys[0], n_atoms)
        features = jax.random.normal(fkey, (n_atoms, dims[0]), dtype=jnp.float32)
        ref = jax.block_until_ready(reference(features, weights, biases))

        out = jax.block_until_ready(bmm_atomic_network(features, weights, biases))
        assert out.shape == (n_atoms, final_out), out.shape
        assert jnp.allclose(out, ref, rtol=1e-4, atol=1e-5), "f32 mismatch vs reference"

    # bf16 MXU path (recommended on v6e/v7x): bf16 weights/activations into the
    # MXU, f32 accumulation + f32 bias/CELU; validated at a looser tolerance.
    out_bf16 = jax.block_until_ready(
        bmm_atomic_network(features, weights, biases, use_bf16_mxu=True))
    assert out_bf16.shape == ref.shape
    assert jnp.allclose(out_bf16, ref, rtol=1e-1, atol=1e-1), "bf16 mismatch vs reference"

    print("KERNEL_OK")
</pallas_src>

<mosaic_0001>
module attributes {stable_mosaic.version = 11 : i64} {
  func.func @_bmm_mlp_kernel(%arg0: i32, %arg1: memref<128x32xf32, #tpu.memory_space<vmem>>, %arg2: memref<128x32xf32, #tpu.memory_space<vmem>>, %arg3: memref<128x1xf32, #tpu.memory_space<vmem>>, %arg4: memref<64x128xf32, #tpu.memory_space<vmem>>, %arg5: memref<64x1xf32, #tpu.memory_space<vmem>>, %arg6: memref<1x64xf32, #tpu.memory_space<vmem>>, %arg7: memref<1x1xf32, #tpu.memory_space<vmem>>, %arg8: memref<1x128xf32, #tpu.memory_space<vmem>>) attributes {dimension_semantics = [#tpu.dimension_semantics<parallel>], iteration_bounds = array<i64: 2>, scalar_prefetch = 0 : i64, scratch_operands = 0 : i64, tpu.core_type = #tpu.core_type<tc>, window_params = [{transform_indices = @transform_0, window_bounds = array<i64: 128, 32>}, {pipeline_mode = #tpu.pipeline_mode<synchronous>, transform_indices = @transform_1, window_bounds = array<i64: 128, 32>}, {pipeline_mode = #tpu.pipeline_mode<synchronous>, transform_indices = @transform_2, window_bounds = array<i64: 128, 1>}, {pipeline_mode = #tpu.pipeline_mode<synchronous>, transform_indices = @transform_3, window_bounds = array<i64: 64, 128>}, {pipeline_mode = #tpu.pipeline_mode<synchronous>, transform_indices = @transform_4, window_bounds = array<i64: 64, 1>}, {pipeline_mode = #tpu.pipeline_mode<synchronous>, transform_indices = @transform_5, window_bounds = array<i64: 1, 64>}, {pipeline_mode = #tpu.pipeline_mode<synchronous>, transform_indices = @transform_6, window_bounds = array<i64: 1, 1>}, {transform_indices = @transform_7, window_bounds = array<i64: 1, 128>}]} {
    %c0 = arith.constant 0 : index
    %c0_0 = arith.constant 0 : index
    %0 = vector.load %arg1[%c0, %c0_0] : memref<128x32xf32, #tpu.memory_space<vmem>>, vector<128x32xf32>
    %c0_1 = arith.constant 0 : index
    %c0_2 = arith.constant 0 : index
    %1 = vector.load %arg2[%c0_1, %c0_2] : memref<128x32xf32, #tpu.memory_space<vmem>>, vector<128x32xf32>
    %cst = arith.constant dense<0.000000e+00> : vector<128x128xf32>
    %2 = tpu.matmul %1, %0, %cst {dimension_numbers = #tpu.dot_dimension_numbers<[1], [1], [0], [0], [0, 0, 1, 0], [], []>} : vector<128x32xf32>, vector<128x32xf32>, vector<128x128xf32> -> vector<128x128xf32>
    %c0_3 = arith.constant 0 : index
    %c0_4 = arith.constant 0 : index
    %3 = vector.load %arg3[%c0_3, %c0_4] : memref<128x1xf32, #tpu.memory_space<vmem>>, vector<128x1xf32>
    %4 = vector.broadcast %3 : vector<128x1xf32> to vector<128x128xf32>
    %5 = arith.addf %2, %4 : vector<128x128xf32>
    %cst_5 = arith.constant 0.000000e+00 : f32
    %6 = vector.broadcast %cst_5 : f32 to vector<128x128xf32>
    %7 = arith.minimumf %5, %6 : vector<128x128xf32>
    %cst_6 = arith.constant 1.000000e+01 : f32
    %8 = vector.broadcast %cst_6 : f32 to vector<128x128xf32>
    %9 = arith.mulf %7, %8 : vector<128x128xf32>
    %10 = math.exp %9 : vector<128x128xf32>
    %cst_7 = arith.constant 1.000000e+00 : f32
    %11 = vector.broadcast %cst_7 : f32 to vector<128x128xf32>
    %12 = arith.subf %10, %11 : vector<128x128xf32>
    %cst_8 = arith.constant 0.166666672 : f32
    %13 = vector.broadcast %cst_8 : f32 to vector<128x128xf32>
    %14 = arith.mulf %9, %13 : vector<128x128xf32>
    %cst_9 = arith.constant 5.000000e-01 : f32
    %15 = vector.broadcast %cst_9 : f32 to vector<128x128xf32>
    %16 = arith.addf %15, %14 : vector<128x128xf32>
    %17 = arith.mulf %9, %16 : vector<128x128xf32>
    %cst_10 = arith.constant 1.000000e+00 : f32
    %18 = vector.broadcast %cst_10 : f32 to vector<128x128xf32>
    %19 = arith.addf %18, %17 : vector<128x128xf32>
    %20 = arith.mulf %9, %19 : vector<128x128xf32>
    %cst_11 = arith.constant -4.000000e-02 : f32
    %21 = vector.broadcast %cst_11 : f32 to vector<128x128xf32>
    %22 = arith.cmpf ogt, %9, %21 : vector<128x128xf32>
    %23 = arith.select %22, %20, %12 : vector<128x128xi1>, vector<128x128xf32>
    %cst_12 = arith.constant 0.000000e+00 : f32
    %24 = vector.broadcast %cst_12 : f32 to vector<128x128xf32>
    %25 = arith.cmpf ogt, %5, %24 : vector<128x128xf32>
    %cst_13 = arith.constant 1.000000e-01 : f32
    %26 = vector.broadcast %cst_13 : f32 to vector<128x128xf32>
    %27 = arith.mulf %26, %23 : vector<128x128xf32>
    %28 = arith.select %25, %5, %27 : vector<128x128xi1>, vector<128x128xf32>
    %c0_14 = arith.constant 0 : index
    %c0_15 = arith.constant 0 : index
    %29 = vector.load %arg4[%c0_14, %c0_15] : memref<64x128xf32, #tpu.memory_space<vmem>>, vector<64x128xf32>
    %c0_16 = arith.constant 0 : index
    %c0_17 = arith.constant 0 : index
    %30 = vector.load %arg5[%c0_16, %c0_17] : memref<64x1xf32, #tpu.memory_space<vmem>>, vector<64x1xf32>
    %cst_18 = arith.constant dense<0.000000e+00> : vector<64x128xf32>
    %31 = tpu.matmul %29, %28, %cst_18 {dimension_numbers = #tpu.dot_dimension_numbers<[1], [0], [0], [1], [0, 0, 1, 1], [], []>} : vector<64x128xf32>, vector<128x128xf32>, vector<64x128xf32> -> vector<64x128xf32>
    %32 = vector.broadcast %30 : vector<64x1xf32> to vector<64x128xf32>
    %33 = arith.addf %31, %32 : vector<64x128xf32>
    %cst_19 = arith.constant 0.000000e+00 : f32
    %34 = vector.broadcast %cst_19 : f32 to vector<64x128xf32>
    %35 = arith.minimumf %33, %34 : vector<64x128xf32>
    %cst_20 = arith.constant 1.000000e+01 : f32
    %36 = vector.broadcast %cst_20 : f32 to vector<64x128xf32>
    %37 = arith.mulf %35, %36 : vector<64x128xf32>
    %38 = math.exp %37 : vector<64x128xf32>
    %cst_21 = arith.constant 1.000000e+00 : f32
    %39 = vector.broadcast %cst_21 : f32 to vector<64x128xf32>
    %40 = arith.subf %38, %39 : vector<64x128xf32>
    %cst_22 = arith.constant 0.166666672 : f32
    %41 = vector.broadcast %cst_22 : f32 to vector<64x128xf32>
    %42 = arith.mulf %37, %41 : vector<64x128xf32>
    %cst_23 = arith.constant 5.000000e-01 : f32
    %43 = vector.broadcast %cst_23 : f32 to vector<64x128xf32>
    %44 = arith.addf %43, %42 : vector<64x128xf32>
    %45 = arith.mulf %37, %44 : vector<64x128xf32>
    %cst_24 = arith.constant 1.000000e+00 : f32
    %46 = vector.broadcast %cst_24 : f32 to vector<64x128xf32>
    %47 = arith.addf %46, %45 : vector<64x128xf32>
    %48 = arith.mulf %37, %47 : vector<64x128xf32>
    %cst_25 = arith.constant -4.000000e-02 : f32
    %49 = vector.broadcast %cst_25 : f32 to vector<64x128xf32>
    %50 = arith.cmpf ogt, %37, %49 : vector<64x128xf32>
    %51 = arith.select %50, %48, %40 : vector<64x128xi1>, vector<64x128xf32>
    %cst_26 = arith.constant 0.000000e+00 : f32
    %52 = vector.broadcast %cst_26 : f32 to vector<64x128xf32>
    %53 = arith.cmpf ogt, %33, %52 : vector<64x128xf32>
    %cst_27 = arith.constant 1.000000e-01 : f32
    %54 = vector.broadcast %cst_27 : f32 to vector<64x128xf32>
    %55 = arith.mulf %54, %51 : vector<64x128xf32>
    %56 = arith.select %53, %33, %55 : vector<64x128xi1>, vector<64x128xf32>
    %c0_28 = arith.constant 0 : index
    %c0_29 = arith.constant 0 : index
    %57 = vector.load %arg6[%c0_28, %c0_29] : memref<1x64xf32, #tpu.memory_space<vmem>>, vector<1x64xf32>
    %c0_30 = arith.constant 0 : index
    %c0_31 = arith.constant 0 : index
    %58 = vector.load %arg7[%c0_30, %c0_31] : memref<1x1xf32, #tpu.memory_space<vmem>>, vector<1x1xf32>
    %cst_32 = arith.constant dense<0.000000e+00> : vector<1x128xf32>
    %59 = tpu.matmul %57, %56, %cst_32 {dimension_numbers = #tpu.dot_dimension_numbers<[1], [0], [0], [1], [0, 0, 1, 1], [], []>} : vector<1x64xf32>, vector<64x128xf32>, vector<1x128xf32> -> vector<1x128xf32>
    %60 = vector.broadcast %58 : vector<1x1xf32> to vector<1x128xf32>
    %61 = arith.addf %59, %60 : vector<1x128xf32>
    %c0_33 = arith.constant 0 : index
    %c0_34 = arith.constant 0 : index
    %62 = vector.load %arg8[%c0_33, %c0_34] : memref<1x128xf32, #tpu.memory_space<vmem>>, vector<1x128xf32>
    tpu.vector_store %arg8[%c0_33, %c0_34], %61 {strides = array<i32>} : memref<1x128xf32, #tpu.memory_space<vmem>>, vector<1x128xf32>,
    return
  }
  func.func @transform_0(%arg0: i32) -> (i32, i32) {
    %c0_i32 = arith.constant 0 : i32
    %c0_i32_0 = arith.constant 0 : i32
    return %arg0, %c0_i32 : i32, i32
  }
  func.func @transform_1(%arg0: i32) -> (i32, i32) {
    %c0_i32 = arith.constant 0 : i32
    %c0_i32_0 = arith.constant 0 : i32
    %c0_i32_1 = arith.constant 0 : i32
    return %c0_i32, %c0_i32_0 : i32, i32
  }
  func.func @transform_2(%arg0: i32) -> (i32, i32) {
    %c0_i32 = arith.constant 0 : i32
    %c0_i32_0 = arith.constant 0 : i32
    %c0_i32_1 = arith.constant 0 : i32
    return %c0_i32, %c0_i32_0 : i32, i32
  }
  func.func @transform_3(%arg0: i32) -> (i32, i32) {
    %c0_i32 = arith.constant 0 : i32
    %c0_i32_0 = arith.constant 0 : i32
    %c0_i32_1 = arith.constant 0 : i32
    return %c0_i32, %c0_i32_0 : i32, i32
  }
  func.func @transform_4(%arg0: i32) -> (i32, i32) {
    %c0_i32 = arith.constant 0 : i32
    %c0_i32_0 = arith.constant 0 : i32
    %c0_i32_1 = arith.constant 0 : i32
    return %c0_i32, %c0_i32_0 : i32, i32
  }
  func.func @transform_5(%arg0: i32) -> (i32, i32) {
    %c0_i32 = arith.constant 0 : i32
    %c0_i32_0 = arith.constant 0 : i32
    %c0_i32_1 = arith.constant 0 : i32
    return %c0_i32, %c0_i32_0 : i32, i32
  }
  func.func @transform_6(%arg0: i32) -> (i32, i32) {
    %c0_i32 = arith.constant 0 : i32
    %c0_i32_0 = arith.constant 0 : i32
    %c0_i32_1 = arith.constant 0 : i32
    return %c0_i32, %c0_i32_0 : i32, i32
  }
  func.func @transform_7(%arg0: i32) -> (i32, i32) {
    %c0_i32 = arith.constant 0 : i32
    %c0_i32_0 = arith.constant 0 : i32
    return %c0_i32, %arg0 : i32, i32
  }
}

module attributes {stable_mosaic.version = 11 : i64} {
  func.func @_bmm_mlp_kernel(%arg0: i32, %arg1: memref<128x32xf32, #tpu.memory_space<vmem>>, %arg2: memref<128x32xf32, #tpu.memory_space<vmem>>, %arg3: memref<128x1xf32, #tpu.memory_space<vmem>>, %arg4: memref<64x128xf32, #tpu.memory_space<vmem>>, %arg5: memref<64x1xf32, #tpu.memory_space<vmem>>, %arg6: memref<1x64xf32, #tpu.memory_space<vmem>>, %arg7: memref<1x1xf32, #tpu.memory_space<vmem>>, %arg8: memref<1x128xf32, #tpu.memory_space<vmem>>) attributes {dimension_semantics = [#tpu.dimension_semantics<parallel>], iteration_bounds = array<i64: 2>, scalar_prefetch = 0 : i64, scratch_operands = 0 : i64, tpu.core_type = #tpu.core_type<tc>, window_params = [{transform_indices = @transform_0, window_bounds = array<i64: 128, 32>}, {pipeline_mode = #tpu.pipeline_mode<synchronous>, transform_indices = @transform_1, window_bounds = array<i64: 128, 32>}, {pipeline_mode = #tpu.pipeline_mode<synchronous>, transform_indices = @transform_2, window_bounds = array<i64: 128, 1>}, {pipeline_mode = #tpu.pipeline_mode<synchronous>, transform_indices = @transform_3, window_bounds = array<i64: 64, 128>}, {pipeline_mode = #tpu.pipeline_mode<synchronous>, transform_indices = @transform_4, window_bounds = array<i64: 64, 1>}, {pipeline_mode = #tpu.pipeline_mode<synchronous>, transform_indices = @transform_5, window_bounds = array<i64: 1, 64>}, {pipeline_mode = #tpu.pipeline_mode<synchronous>, transform_indices = @transform_6, window_bounds = array<i64: 1, 1>}, {transform_indices = @transform_7, window_bounds = array<i64: 1, 128>}]} {
    %c0 = arith.constant 0 : index
    %c0_0 = arith.constant 0 : index
    %0 = vector.load %arg1[%c0, %c0_0] : memref<128x32xf32, #tpu.memory_space<vmem>>, vector<128x32xf32>
    %c0_1 = arith.constant 0 : index
    %c0_2 = arith.constant 0 : index
    %1 = vector.load %arg2[%c0_1, %c0_2] : memref<128x32xf32, #tpu.memory_space<vmem>>, vector<128x32xf32>
    %cst = arith.constant dense<0.000000e+00> : vector<128x128xf32>
    %2 = tpu.matmul %1, %0, %cst {dimension_numbers = #tpu.dot_dimension_numbers<[1], [1], [0], [0], [0, 0, 1, 0], [], []>} : vector<128x32xf32>, vector<128x32xf32>, vector<128x128xf32> -> vector<128x128xf32>
    %c0_3 = arith.constant 0 : index
    %c0_4 = arith.constant 0 : index
    %3 = vector.load %arg3[%c0_3, %c0_4] : memref<128x1xf32, #tpu.memory_space<vmem>>, vector<128x1xf32>
    %4 = vector.broadcast %3 : vector<128x1xf32> to vector<128x128xf32>
    %5 = arith.addf %2, %4 : vector<128x128xf32>
    %cst_5 = arith.constant 0.000000e+00 : f32
    %6 = vector.broadcast %cst_5 : f32 to vector<128x128xf32>
    %7 = arith.minimumf %5, %6 : vector<128x128xf32>
    %cst_6 = arith.constant 1.000000e+01 : f32
    %8 = vector.broadcast %cst_6 : f32 to vector<128x128xf32>
    %9 = arith.mulf %7, %8 : vector<128x128xf32>
    %10 = math.exp %9 : vector<128x128xf32>
    %cst_7 = arith.constant 1.000000e+00 : f32
    %11 = vector.broadcast %cst_7 : f32 to vector<128x128xf32>
    %12 = arith.subf %10, %11 : vector<128x128xf32>
    %cst_8 = arith.constant 0.166666672 : f32
    %13 = vector.broadcast %cst_8 : f32 to vector<128x128xf32>
    %14 = arith.mulf %9, %13 : vector<128x128xf32>
    %cst_9 = arith.constant 5.000000e-01 : f32
    %15 = vector.broadcast %cst_9 : f32 to vector<128x128xf32>
    %16 = arith.addf %15, %14 : vector<128x128xf32>
    %17 = arith.mulf %9, %16 : vector<128x128xf32>
    %cst_10 = arith.constant 1.000000e+00 : f32
    %18 = vector.broadcast %cst_10 : f32 to vector<128x128xf32>
    %19 = arith.addf %18, %17 : vector<128x128xf32>
    %20 = arith.mulf %9, %19 : vector<128x128xf32>
    %cst_11 = arith.constant -4.000000e-02 : f32
    %21 = vector.broadcast %cst_11 : f32 to vector<128x128xf32>
    %22 = arith.cmpf ogt, %9, %21 : vector<128x128xf32>
    %23 = arith.select %22, %20, %12 : vector<128x128xi1>, vector<128x128xf32>
    %cst_12 = arith.constant 0.000000e+00 : f32
    %24 = vector.broadcast %cst_12 : f32 to vector<128x128xf32>
    %25 = arith.cmpf ogt, %5, %24 : vector<128x128xf32>
    %cst_13 = arith.constant 1.000000e-01 : f32
    %26 = vector.broadcast %cst_13 : f32 to vector<128x128xf32>
    %27 = arith.mulf %26, %23 : vector<128x128xf32>
    %28 = arith.select %25, %5, %27 : vector<128x128xi1>, vector<128x128xf32>
    %c0_14 = arith.constant 0 : index
    %c0_15 = arith.constant 0 : index
    %29 = vector.load %arg4[%c0_14, %c0_15] : memref<64x128xf32, #tpu.memory_space<vmem>>, vector<64x128xf32>
    %c0_16 = arith.constant 0 : index
    %c0_17 = arith.constant 0 : index
    %30 = vector.load %arg5[%c0_16, %c0_17] : memref<64x1xf32, #tpu.memory_space<vmem>>, vector<64x1xf32>
    %cst_18 = arith.constant dense<0.000000e+00> : vector<64x128xf32>
    %31 = tpu.matmul %29, %28, %cst_18 {dimension_numbers = #tpu.dot_dimension_numbers<[1], [0], [0], [1], [0, 0, 1, 1], [], []>} : vector<64x128xf32>, vector<128x128xf32>, vector<64x128xf32> -> vector<64x128xf32>
    %32 = vector.broadcast %30 : vector<64x1xf32> to vector<64x128xf32>
    %33 = arith.addf %31, %32 : vector<64x128xf32>
    %cst_19 = arith.constant 0.000000e+00 : f32
    %34 = vector.broadcast %cst_19 : f32 to vector<64x128xf32>
    %35 = arith.minimumf %33, %34 : vector<64x128xf32>
    %cst_20 = arith.constant 1.000000e+01 : f32
    %36 = vector.broadcast %cst_20 : f32 to vector<64x128xf32>
    %37 = arith.mulf %35, %36 : vector<64x128xf32>
    %38 = math.exp %37 : vector<64x128xf32>
    %cst_21 = arith.constant 1.000000e+00 : f32
    %39 = vector.broadcast %cst_21 : f32 to vector<64x128xf32>
    %40 = arith.subf %38, %39 : vector<64x128xf32>
    %cst_22 = arith.constant 0.166666672 : f32
    %41 = vector.broadcast %cst_22 : f32 to vector<64x128xf32>
    %42 = arith.mulf %37, %41 : vector<64x128xf32>
    %cst_23 = arith.constant 5.000000e-01 : f32
    %43 = vector.broadcast %cst_23 : f32 to vector<64x128xf32>
    %44 = arith.addf %43, %42 : vector<64x128xf32>
    %45 = arith.mulf %37, %44 : vector<64x128xf32>
    %cst_24 = arith.constant 1.000000e+00 : f32
    %46 = vector.broadcast %cst_24 : f32 to vector<64x128xf32>
    %47 = arith.addf %46, %45 : vector<64x128xf32>
    %48 = arith.mulf %37, %47 : vector<64x128xf32>
    %cst_25 = arith.constant -4.000000e-02 : f32
    %49 = vector.broadcast %cst_25 : f32 to vector<64x128xf32>
    %50 = arith.cmpf ogt, %37, %49 : vector<64x128xf32>
    %51 = arith.select %50, %48, %40 : vector<64x128xi1>, vector<64x128xf32>
    %cst_26 = arith.constant 0.000000e+00 : f32
    %52 = vector.broadcast %cst_26 : f32 to vector<64x128xf32>
    %53 = arith.cmpf ogt, %33, %52 : vector<64x128xf32>
    %cst_27 = arith.constant 1.000000e-01 : f32
    %54 = vector.broadcast %cst_27 : f32 to vector<64x128xf32>
    %55 = arith.mulf %54, %51 : vector<64x128xf32>
    %56 = arith.select %53, %33, %55 : vector<64x128xi1>, vector<64x128xf32>
    %c0_28 = arith.constant 0 : index
    %c0_29 = arith.constant 0 : index
    %57 = vector.load %arg6[%c0_28, %c0_29] : memref<1x64xf32, #tpu.memory_space<vmem>>, vector<1x64xf32>
    %c0_30 = arith.constant 0 : index
    %c0_31 = arith.constant 0 : index
    %58 = vector.load %arg7[%c0_30, %c0_31] : memref<1x1xf32, #tpu.memory_space<vmem>>, vector<1x1xf32>
    %cst_32 = arith.constant dense<0.000000e+00> : vector<1x128xf32>
    %59 = tpu.matmul %57, %56, %cst_32 {dimension_numbers = #tpu.dot_dimension_numbers<[1], [0], [0], [1], [0, 0, 1, 1], [], []>} : vector<1x64xf32>, vector<64x128xf32>, vector<1x128xf32> -> vector<1x128xf32>
    %60 = vector.broadcast %58 : vector<1x1xf32> to vector<1x128xf32>
    %61 = arith.addf %59, %60 : vector<1x128xf32>
    %c0_33 = arith.constant 0 : index
    %c0_34 = arith.constant 0 : index
    %62 = vector.load %arg8[%c0_33, %c0_34] : memref<1x128xf32, #tpu.memory_space<vmem>>, vector<1x128xf32>
    tpu.vector_store %arg8[%c0_33, %c0_34], %61 {strides = array<i32>} : memref<1x128xf32, #tpu.memory_space<vmem>>, vector<1x128xf32>,
    return
  }
  func.func @transform_0(%arg0: i32) -> (i32, i32) {
    %c0_i32 = arith.constant 0 : i32
    %c0_i32_0 = arith.constant 0 : i32
    return %arg0, %c0_i32 : i32, i32
  }
  func.func @transform_1(%arg0: i32) -> (i32, i32) {
    %c0_i32 = arith.constant 0 : i32
    %c0_i32_0 = arith.constant 0 : i32
    %c0_i32_1 = arith.constant 0 : i32
    return %c0_i32, %c0_i32_0 : i32, i32
  }
  func.func @transform_2(%arg0: i32) -> (i32, i32) {
    %c0_i32 = arith.constant 0 : i32
    %c0_i32_0 = arith.constant 0 : i32
    %c0_i32_1 = arith.constant 0 : i32
    return %c0_i32, %c0_i32_0 : i32, i32
  }
  func.func @transform_3(%arg0: i32) -> (i32, i32) {
    %c0_i32 = arith.constant 0 : i32
    %c0_i32_0 = arith.constant 0 : i32
    %c0_i32_1 = arith.constant 0 : i32
    return %c0_i32, %c0_i32_0 : i32, i32
  }
  func.func @transform_4(%arg0: i32) -> (i32, i32) {
    %c0_i32 = arith.constant 0 : i32
    %c0_i32_0 = arith.constant 0 : i32
    %c0_i32_1 = arith.constant 0 : i32
    return %c0_i32, %c0_i32_0 : i32, i32
  }
  func.func @transform_5(%arg0: i32) -> (i32, i32) {
    %c0_i32 = arith.constant 0 : i32
    %c0_i32_0 = arith.constant 0 : i32
    %c0_i32_1 = arith.constant 0 : i32
    return %c0_i32, %c0_i32_0 : i32, i32
  }
  func.func @transform_6(%arg0: i32) -> (i32, i32) {
    %c0_i32 = arith.constant 0 : i32
    %c0_i32_0 = arith.constant 0 : i32
    %c0_i32_1 = arith.constant 0 : i32
    return %c0_i32, %c0_i32_0 : i32, i32
  }
  func.func @transform_7(%arg0: i32) -> (i32, i32) {
    %c0_i32 = arith.constant 0 : i32
    %c0_i32_0 = arith.constant 0 : i32
    return %c0_i32, %arg0 : i32, i32
  }
}

</mosaic_0001>

<llo_original>
// kernel: tpu_custom_call.1
$region0: #{tpu_custom_call.1}
  #allocation0 [shape = 'u32[]', space=smem, size = 0x4, offset = 0x4, fixed_abs, tag = 'smem constant byte address 0x4 - core index']
  #allocation1 [shape = 'u32[144,128]{1,0:T(1,128)}', space=vmem, size = 0x12000, scoped, tag = 'internal scratch']
  #allocation2 [shape = 'f32[1,1]{1,0:T(1,128)S(1)}', space=vmem, size = 0x200, scoped, tag = 'scoped memory for tpu_custom_call.1']
  %s0 = inlined_call_operand.vmem [shape: f32[250,32], index: 0, kind: input, shape index: {}]
  %s1 = inlined_call_operand.vmem [shape: f32[128,32], index: 1, kind: input, shape index: {}]
  %s2 = inlined_call_operand.vmem [shape: f32[128,1], index: 2, kind: input, shape index: {}]
  %s3 = inlined_call_operand.vmem [shape: f32[64,128], index: 3, kind: input, shape index: {}]
  %s4 = inlined_call_operand.vmem [shape: f32[64,1], index: 4, kind: input, shape index: {}]
  %s5 = inlined_call_operand.vmem [shape: f32[1,64], index: 5, kind: input, shape index: {}]
  %s6 = inlined_call_operand.<no memory space> [shape: f32[1,1], index: 6, kind: input, shape index: {}]
  %s7 = inlined_call_operand.hbm [shape: f32[1,250], index: 7, kind: output, shape index: {}]
  %s8 = sld [smem:[#allocation0]]
  $region61: #{tpu_custom_call.1} parent=0
    _
  %s10 = ssub.s32 1, %s8
  %s11 = scalar_select 0, %s10, %s8
  %v12 = vstv %s6
  %13 = vst [vmem:[#allocation2] sm:$0x1] %v12
  $region1: #{tpu_custom_call.1} parent=0
    #allocation3 [shape = 'u8[1024]{0}', space=vmem, size = 0x400, scoped, tag = 'output window, operand 0']
    #allocation4 [shape = 's32[2]{0}', space=sflag, size = 0x8, scoped, tag = 'scoped memory for tpu_custom_call.1']
    %14 = vsyncpa [#allocation4], 0
    %s15 = scalar_lea.sflag [#allocation4], 1
    %16 = vsyncpa %s15, 0
    loop: start=0, step=1, limit=4
    $region2: #{tpu_custom_call.1} parent=1 // loop_pre_header
      _
    $region3: #{tpu_custom_call.1} parent=1 // loop_header
      %s18 = sphi 0, %s22
      %p19 = scmp.ge.s32.totalorder %s18, 4
      %s28 = sphi 0, %s30
      %s31 = sphi 0, %s28
      %s32 = sphi 0, %s31
      %s48 = sphi 0, %s32
      %s52 = sphi 0, %s52
      %s54 = sphi 0, %s52
      %s55 = sphi 0, %s54
      %s69 = sphi 0, %s55
      %s73 = sphi 0, %s73
      %s75 = sphi 0, %s73
      %s76 = sphi 0, %s75
      %s90 = sphi 0, %s76
      %s94 = sphi 0, %s94
      %s96 = sphi 0, %s94
      %s97 = sphi 0, %s96
      %s111 = sphi 0, %s97
      %s115 = sphi 0, %s115
      %s117 = sphi 0, %s115
      %s118 = sphi 0, %s117
      %s132 = sphi 0, %s118
      %s136 = sphi 0, %s136
      %s138 = sphi 0, %s136
      %s139 = sphi 0, %s138
      %s153 = sphi 0, %s139
      %s157 = sphi 0, %s157
      %s159 = sphi 0, %s157
      %s160 = sphi 0, %s159
      %s174 = sphi 0, %s160
      %s180 = sphi 0, %s182
      %s183 = sphi 0, %s180
      %s184 = sphi 0, %s183
      %s200 = sphi 0, %s184
    $region4: #{tpu_custom_call.1} parent=1 // loop_header_branch
      %21 = sbr.rel (%p19) target = $region8
    $region5: #{tpu_custom_call.1} parent=1 // loop_body
      %s23 = ssub.s32 %s18, 1
      %s24 = ssub.s32 %s18, 2
      %s25 = sadd.s32 %s18, 1
      %s26 = ssub.s32 %s18, %s25
      %p27 = scmp.eq.s32.totalorder %s26, 0
      %s29 = sadd.s32 %s28, 1
      %s30 = scalar_select %p27, %s28, %s29
      %p33 = pneg %p27
      %p34 = scmp.eq.s32.totalorder %s18, 1
      %p35 = por %p33, %p34
      %p36 = scmp.ne.s32.totalorder %s28, %s31
      %p37 = scmp.eq.s32.totalorder %s18, 0
      %p38 = por %p36, %p37
      %p39 = scmp.ne.s32.totalorder %s28, %s31
      %p40 = scmp.eq.s32.totalorder %s23, 1
      %p41 = por %p39, %p40
      %p42 = scmp.ne.s32.totalorder %s31, %s32
      %p43 = scmp.eq.s32.totalorder %s23, 0
      %p44 = por %p42, %p43
      %p45 = scmp.ne.s32.totalorder %s31, %s32
      %p46 = scmp.eq.s32.totalorder %s24, 1
      %p47 = por %p45, %p46
      %p49 = scmp.ne.s32.totalorder %s32, %s48
      %p50 = scmp.eq.s32.totalorder %s24, 0
      %p51 = por %p49, %p50
      %s53 = sadd.s32 %s52, 1
      %p56 = scmp.eq.s32.totalorder %s18, 1
      %p57 = scmp.ne.s32.totalorder %s52, %s54
      %p58 = scmp.eq.s32.totalorder %s18, 0
      %p59 = por %p57, %p58
      %p60 = scmp.ne.s32.totalorder %s52, %s54
      %p61 = scmp.eq.s32.totalorder %s23, 1
      %p62 = por %p60, %p61
      %p63 = scmp.ne.s32.totalorder %s54, %s55
      %p64 = scmp.eq.s32.totalorder %s23, 0
      %p65 = por %p63, %p64
      %p66 = scmp.ne.s32.totalorder %s54, %s55
      %p67 = scmp.eq.s32.totalorder %s24, 1
      %p68 = por %p66, %p67
      %p70 = scmp.ne.s32.totalorder %s55, %s69
      %p71 = scmp.eq.s32.totalorder %s24, 0
      %p72 = por %p70, %p71
      %s74 = sadd.s32 %s73, 1
      %p77 = scmp.eq.s32.totalorder %s18, 1
      %p78 = scmp.ne.s32.totalorder %s73, %s75
      %p79 = scmp.eq.s32.totalorder %s18, 0
      %p80 = por %p78, %p79
      %p81 = scmp.ne.s32.totalorder %s73, %s75
      %p82 = scmp.eq.s32.totalorder %s23, 1
      %p83 = por %p81, %p82
      %p84 = scmp.ne.s32.totalorder %s75, %s76
      %p85 = scmp.eq.s32.totalorder %s23, 0
      %p86 = por %p84, %p85
      %p87 = scmp.ne.s32.totalorder %s75, %s76
      %p88 = scmp.eq.s32.totalorder %s24, 1
      %p89 = por %p87, %p88
      %p91 = scmp.ne.s32.totalorder %s76, %s90
      %p92 = scmp.eq.s32.totalorder %s24, 0
      %p93 = por %p91, %p92
      %s95 = sadd.s32 %s94, 1
      %p98 = scmp.eq.s32.totalorder %s18, 1
      %p99 = scmp.ne.s32.totalorder %s94, %s96
      %p100 = scmp.eq.s32.totalorder %s18, 0
      %p101 = por %p99, %p100
      %p102 = scmp.ne.s32.totalorder %s94, %s96
      %p103 = scmp.eq.s32.totalorder %s23, 1
      %p104 = por %p102, %p103
      %p105 = scmp.ne.s32.totalorder %s96, %s97
      %p106 = scmp.eq.s32.totalorder %s23, 0
      %p107 = por %p105, %p106
      %p108 = scmp.ne.s32.totalorder %s96, %s97
      %p109 = scmp.eq.s32.totalorder %s24, 1
      %p110 = por %p108, %p109
      %p112 = scmp.ne.s32.totalorder %s97, %s111
      %p113 = scmp.eq.s32.totalorder %s24, 0
      %p114 = por %p112, %p113
      %s116 = sadd.s32 %s115, 1
      %p119 = scmp.eq.s32.totalorder %s18, 1
      %p120 = scmp.ne.s32.totalorder %s115, %s117
      %p121 = scmp.eq.s32.totalorder %s18, 0
      %p122 = por %p120, %p121
      %p123 = scmp.ne.s32.totalorder %s115, %s117
      %p124 = scmp.eq.s32.totalorder %s23, 1
      %p125 = por %p123, %p124
      %p126 = scmp.ne.s32.totalorder %s117, %s118
      %p127 = scmp.eq.s32.totalorder %s23, 0
      %p128 = por %p126, %p127
      %p129 = scmp.ne.s32.totalorder %s117, %s118
      %p130 = scmp.eq.s32.totalorder %s24, 1
      %p131 = por %p129, %p130
      %p133 = scmp.ne.s32.totalorder %s118, %s132
      %p134 = scmp.eq.s32.totalorder %s24, 0
      %p135 = por %p133, %p134
      %s137 = sadd.s32 %s136, 1
      %p140 = scmp.eq.s32.totalorder %s18, 1
      %p141 = scmp.ne.s32.totalorder %s136, %s138
      %p142 = scmp.eq.s32.totalorder %s18, 0
      %p143 = por %p141, %p142
      %p144 = scmp.ne.s32.totalorder %s136, %s138
      %p145 = scmp.eq.s32.totalorder %s23, 1
      %p146 = por %p144, %p145
      %p147 = scmp.ne.s32.totalorder %s138, %s139
      %p148 = scmp.eq.s32.totalorder %s23, 0
      %p149 = por %p147, %p148
      %p150 = scmp.ne.s32.totalorder %s138, %s139
      %p151 = scmp.eq.s32.totalorder %s24, 1
      %p152 = por %p150, %p151
      %p154 = scmp.ne.s32.totalorder %s139, %s153
      %p155 = scmp.eq.s32.totalorder %s24, 0
      %p156 = por %p154, %p155
      %s158 = sadd.s32 %s157, 1
      %p161 = scmp.eq.s32.totalorder %s18, 1
      %p162 = scmp.ne.s32.totalorder %s157, %s159
      %p163 = scmp.eq.s32.totalorder %s18, 0
      %p164 = por %p162, %p163
      %p165 = scmp.ne.s32.totalorder %s157, %s159
      %p166 = scmp.eq.s32.totalorder %s23, 1
      %p167 = por %p165, %p166
      %p168 = scmp.ne.s32.totalorder %s159, %s160
      %p169 = scmp.eq.s32.totalorder %s23, 0
      %p170 = por %p168, %p169
      %p171 = scmp.ne.s32.totalorder %s159, %s160
      %p172 = scmp.eq.s32.totalorder %s24, 1
      %p173 = por %p171, %p172
      %p175 = scmp.ne.s32.totalorder %s160, %s174
      %p176 = scmp.eq.s32.totalorder %s24, 0
      %p177 = por %p175, %p176
      %s178 = ssub.s32 %s18, %s25
      %p179 = scmp.eq.s32.totalorder %s178, 0
      %s181 = sadd.s32 %s180, 1
      %s182 = scalar_select %p179, %s180, %s181
      %p185 = pneg %p179
      %p186 = scmp.eq.s32.totalorder %s18, 1
      %p187 = por %p185, %p186
      %p188 = scmp.ne.s32.totalorder %s180, %s183
      %p189 = scmp.eq.s32.totalorder %s18, 0
      %p190 = por %p188, %p189
      %p191 = scmp.ne.s32.totalorder %s180, %s183
      %p192 = scmp.eq.s32.totalorder %s23, 1
      %p193 = por %p191, %p192
      %p194 = scmp.ne.s32.totalorder %s183, %s184
      %p195 = scmp.eq.s32.totalorder %s23, 0
      %p196 = por %p194, %p195
      %p197 = scmp.ne.s32.totalorder %s183, %s184
      %p198 = scmp.eq.s32.totalorder %s24, 1
      %p199 = por %p197, %p198
      %p201 = scmp.ne.s32.totalorder %s184, %s200
      %p202 = scmp.eq.s32.totalorder %s24, 0
      %p203 = por %p201, %p202
      %p204 = scmp.le.s32.totalorder 1, %s18
      %p205 = scmp.lt.s32.totalorder %s18, 3
      %p206 = pnand %p204, %p205
      %p207 = pneg %p206
      // Predicated region
      $region9: #{tpu_custom_call.1} parent=5 // pred_check
        _
      $region10: #{tpu_custom_call.1} parent=5 // pred_check_branch
        %209 = sbr.rel (%p206) target = $region12
      $region11: #{tpu_custom_call.1} parent=5 // pred_region
        %s210 = ssub.s32 %s18, 1
        // Predicated region
        $region13: #{tpu_custom_call.1} parent=11 // pred_check
          %p211 = pneg %p65
        $region14: #{tpu_custom_call.1} parent=11 // pred_check_branch
          %213 = sbr.rel (%p211) target = $region16
        $region15: #{tpu_custom_call.1} parent=11 // pred_region
          _
        $region16: #{tpu_custom_call.1} parent=11 // pred_fallthru
          _
        // Predicated region
        $region17: #{tpu_custom_call.1} parent=11 // pred_check
          %p214 = pneg %p86
        $region18: #{tpu_custom_call.1} parent=11 // pred_check_branch
          %216 = sbr.rel (%p214) target = $region20
        $region19: #{tpu_custom_call.1} parent=11 // pred_region
          _
        $region20: #{tpu_custom_call.1} parent=11 // pred_fallthru
          _
        // Predicated region
        $region21: #{tpu_custom_call.1} parent=11 // pred_check
          %p217 = pneg %p107
        $region22: #{tpu_custom_call.1} parent=11 // pred_check_branch
          %219 = sbr.rel (%p217) target = $region24
        $region23: #{tpu_custom_call.1} parent=11 // pred_region
          _
        $region24: #{tpu_custom_call.1} parent=11 // pred_fallthru
          _
        // Predicated region
        $region25: #{tpu_custom_call.1} parent=11 // pred_check
          %p220 = pneg %p128
        $region26: #{tpu_custom_call.1} parent=11 // pred_check_branch
          %222 = sbr.rel (%p220) target = $region28
        $region27: #{tpu_custom_call.1} parent=11 // pred_region
          _
        $region28: #{tpu_custom_call.1} parent=11 // pred_fallthru
          _
        // Predicated region
        $region29: #{tpu_custom_call.1} parent=11 // pred_check
          %p223 = pneg %p149
        $region30: #{tpu_custom_call.1} parent=11 // pred_check_branch
          %225 = sbr.rel (%p223) target = $region32
        $region31: #{tpu_custom_call.1} parent=11 // pred_region
          _
        $region32: #{tpu_custom_call.1} parent=11 // pred_fallthru
          _
        // Predicated region
        $region33: #{tpu_custom_call.1} parent=11 // pred_check
          %p226 = pneg %p170
        $region34: #{tpu_custom_call.1} parent=11 // pred_check_branch
          %228 = sbr.rel (%p226) target = $region36
        $region35: #{tpu_custom_call.1} parent=11 // pred_region
          _
        $region36: #{tpu_custom_call.1} parent=11 // pred_fallthru
          _
      $region12: #{tpu_custom_call.1} parent=5 // pred_fallthru
        _
      %p229 = scmp.lt.s32.totalorder %s18, 2
      // Predicated region
      $region37: #{tpu_custom_call.1} parent=5 // pred_check
        %p230 = pneg %p229
      $region38: #{tpu_custom_call.1} parent=5 // pred_check_branch
        %232 = sbr.rel (%p230) target = $region40
      $region39: #{tpu_custom_call.1} parent=5 // pred_region
        // Predicated region
        $region41: #{tpu_custom_call.1} parent=39 // pred_check
          %p233 = pneg %p38
        $region42: #{tpu_custom_call.1} parent=39 // pred_check_branch
          %235 = sbr.rel (%p233) target = $region44
        $region43: #{tpu_custom_call.1} parent=39 // pred_region
          %s236 = smul.u32 16, %s18
          %p237 = scmp.lt.s32.totalorder %s236, 31
          %s238 = scalar_select %p237, %s236, 31
          %s239 = smul.addr %s238, 8
          %s240 = scalar_lea.vmem %s0, %s239
          %s241 = smul.u32 16, %s18
        $region44: #{tpu_custom_call.1} parent=39 // pred_fallthru
          _
      $region40: #{tpu_custom_call.1} parent=5 // pred_fallthru
        _
      %p242 = scmp.le.s32.totalorder 1, %s18
      %p243 = scmp.lt.s32.totalorder %s18, 3
      %p244 = pnand %p242, %p243
      %p245 = pneg %p244
      // Predicated region
      $region45: #{tpu_custom_call.1} parent=5 // pred_check
        _
      $region46: #{tpu_custom_call.1} parent=5 // pred_check_branch
        %247 = sbr.rel (%p244) target = $region48
      $region47: #{tpu_custom_call.1} parent=5 // pred_region
        %s248 = ssub.s32 %s18, 1
        %s249 = smul.u32 16, %s23
        %p250 = scmp.lt.s32.totalorder %s249, 31
        %s251 = scalar_select %p250, %s249, 31
        %s252 = smul.addr %s251, 8
        %s253 = scalar_lea.vmem %s0, %s252
        %p254 = pneg %p44
        %p255 = pneg %p41
        %p256 = pneg %p65
        %p257 = pneg %p62
        %p258 = pneg %p86
        %p259 = pneg %p83
        %p260 = pneg %p107
        %p261 = pneg %p104
        %p262 = pneg %p128
        %p263 = pneg %p125
        %p264 = pneg %p149
        %p265 = pneg %p146
        %p266 = pneg %p170
        %p267 = pneg %p167
        %p268 = pneg %p196
        %p269 = pneg %p193
        %s270 = sand.u32 %s183, 1
        %s271 = scalar_lea.sflag [#allocation4], %s270
        %s272 = sand.u32 %s183, 1
        %s273 = scalar_lea.vmem [#allocation3], %s272
        %s274 = smul.u32 16, %s23
        %p275 = scmp.lt.s32.totalorder %s274, 31
        %s276 = scalar_select %p275, %s274, 31
        %s277 = smul.addr %s276, 8
        %s278 = scalar_lea.vmem %s0, %s277
        %s279 = smul.u32 16, %s23
        %v280 = vld [vmem:[%s278] sm:$0xff]
        %v281 = vld [vmem:[%s278 + $0x8] sm:$0xff]
        %v282 = vld [vmem:[%s278 + $0x10] sm:$0xff]
        %v283 = vld [vmem:[%s278 + $0x18] sm:$0xff]
        %v284 = vld [vmem:[%s278 + $0x20] sm:$0xff]
        %v285 = vld [vmem:[%s278 + $0x28] sm:$0xff]
        %v286 = vld [vmem:[%s278 + $0x30] sm:$0xff]
        %v287 = vld [vmem:[%s278 + $0x38] sm:$0xff]
        %v288 = vld [vmem:[%s278 + $0x40] sm:$0xff]
        %v289 = vld [vmem:[%s278 + $0x48] sm:$0xff]
        %v290 = vld [vmem:[%s278 + $0x50] sm:$0xff]
        %v291 = vld [vmem:[%s278 + $0x58] sm:$0xff]
        %v292 = vld [vmem:[%s278 + $0x60] sm:$0xff]
        %v293 = vld [vmem:[%s278 + $0x68] sm:$0xff]
        %v294 = vld [vmem:[%s278 + $0x70] sm:$0xff]
        %v295 = vld [vmem:[%s278 + $0x78] sm:$0xff]
        %v296 = vld [vmem:[%s1] sm:$0xff]
        %v297 = vld [vmem:[%s1 + $0x8] sm:$0xff]
        %v298 = vld [vmem:[%s1 + $0x10] sm:$0xff]
        %v299 = vld [vmem:[%s1 + $0x18] sm:$0xff]
        %v300 = vld [vmem:[%s1 + $0x20] sm:$0xff]
        %v301 = vld [vmem:[%s1 + $0x28] sm:$0xff]
        %v302 = vld [vmem:[%s1 + $0x30] sm:$0xff]
        %v303 = vld [vmem:[%s1 + $0x38] sm:$0xff]
        %v304 = vld [vmem:[%s1 + $0x40] sm:$0xff]
        %v305 = vld [vmem:[%s1 + $0x48] sm:$0xff]
        %v306 = vld [vmem:[%s1 + $0x50] sm:$0xff]
        %v307 = vld [vmem:[%s1 + $0x58] sm:$0xff]
        %v308 = vld [vmem:[%s1 + $0x60] sm:$0xff]
        %v309 = vld [vmem:[%s1 + $0x68] sm:$0xff]
        %v310 = vld [vmem:[%s1 + $0x70] sm:$0xff]
        %v311 = vld [vmem:[%s1 + $0x78] sm:$0xff]
        %v312 = vld [vmem:[%s2] sm:$0xff]
        %v313 = vld [vmem:[%s2 + $0x8] sm:$0xff]
        %v314 = vld [vmem:[%s2 + $0x10] sm:$0xff]
        %v315 = vld [vmem:[%s2 + $0x18] sm:$0xff]
        %v316 = vld [vmem:[%s2 + $0x20] sm:$0xff]
        %v317 = vld [vmem:[%s2 + $0x28] sm:$0xff]
        %v318 = vld [vmem:[%s2 + $0x30] sm:$0xff]
        %v319 = vld [vmem:[%s2 + $0x38] sm:$0xff]
        %v320 = vld [vmem:[%s2 + $0x40] sm:$0xff]
        %v321 = vld [vmem:[%s2 + $0x48] sm:$0xff]
        %v322 = vld [vmem:[%s2 + $0x50] sm:$0xff]
        %v323 = vld [vmem:[%s2 + $0x58] sm:$0xff]
        %v324 = vld [vmem:[%s2 + $0x60] sm:$0xff]
        %v325 = vld [vmem:[%s2 + $0x68] sm:$0xff]
        %v326 = vld [vmem:[%s2 + $0x70] sm:$0xff]
        %v327 = vld [vmem:[%s2 + $0x78] sm:$0xff]
        %329 = vset.pattern.permute.xlu0 0
        %330 = vperm.xlu0 %329, %v312
        %v331 = vpop.permute.xlu0 %330
        %334 = vset.pattern.permute.xlu0 0
        %335 = vperm.xlu0 %334, %v313
        %v336 = vpop.permute.xlu0 %335
        %339 = vset.pattern.permute.xlu0 0
        %340 = vperm.xlu0 %339, %v314
        %v341 = vpop.permute.xlu0 %340
        %344 = vset.pattern.permute.xlu0 0
        %345 = vperm.xlu0 %344, %v315
        %v346 = vpop.permute.xlu0 %345
        %349 = vset.pattern.permute.xlu0 0
        %350 = vperm.xlu0 %349, %v316
        %v351 = vpop.permute.xlu0 %350
        %354 = vset.pattern.permute.xlu0 0
        %355 = vperm.xlu0 %354, %v317
        %v356 = vpop.permute.xlu0 %355
        %359 = vset.pattern.permute.xlu0 0
        %360 = vperm.xlu0 %359, %v318
        %v361 = vpop.permute.xlu0 %360
        %364 = vset.pattern.permute.xlu0 0
        %365 = vperm.xlu0 %364, %v319
        %v366 = vpop.permute.xlu0 %365
        %369 = vset.pattern.permute.xlu0 0
        %370 = vperm.xlu0 %369, %v320
        %v371 = vpop.permute.xlu0 %370
        %374 = vset.pattern.permute.xlu0 0
        %375 = vperm.xlu0 %374, %v321
        %v376 = vpop.permute.xlu0 %375
        %379 = vset.pattern.permute.xlu0 0
        %380 = vperm.xlu0 %379, %v322
        %v381 = vpop.permute.xlu0 %380
        %384 = vset.pattern.permute.xlu0 0
        %385 = vperm.xlu0 %384, %v323
        %v386 = vpop.permute.xlu0 %385
        %389 = vset.pattern.permute.xlu0 0
        %390 = vperm.xlu0 %389, %v324
        %v391 = vpop.permute.xlu0 %390
        %394 = vset.pattern.permute.xlu0 0
        %395 = vperm.xlu0 %394, %v325
        %v396 = vpop.permute.xlu0 %395
        %399 = vset.pattern.permute.xlu0 0
        %400 = vperm.xlu0 %399, %v326
        %v401 = vpop.permute.xlu0 %400
        %404 = vset.pattern.permute.xlu0 0
        %405 = vperm.xlu0 %404, %v327
        %v406 = vpop.permute.xlu0 %405
        %vm408 = vcmask 261120
        %v410 = vsel %vm408, %v296, 0
        %v413 = vsel %vm408, %v297, 0
        %v416 = vsel %vm408, %v298, 0
        %v419 = vsel %vm408, %v299, 0
        %v422 = vsel %vm408, %v300, 0
        %v425 = vsel %vm408, %v301, 0
        %v428 = vsel %vm408, %v302, 0
        %v431 = vsel %vm408, %v303, 0
        %v434 = vsel %vm408, %v304, 0
        %v437 = vsel %vm408, %v305, 0
        %v440 = vsel %vm408, %v306, 0
        %v443 = vsel %vm408, %v307, 0
        %v446 = vsel %vm408, %v308, 0
        %v449 = vsel %vm408, %v309, 0
        %v452 = vsel %vm408, %v310, 0
        %v455 = vsel %vm408, %v311, 0
        %v458 = vsel %vm408, %v280, 0
        %v461 = vsel %vm408, %v281, 0
        %v464 = vsel %vm408, %v282, 0
        %v467 = vsel %vm408, %v283, 0
        %v470 = vsel %vm408, %v284, 0
        %v473 = vsel %vm408, %v285, 0
        %v476 = vsel %vm408, %v286, 0
        %v479 = vsel %vm408, %v287, 0
        %v482 = vsel %vm408, %v288, 0
        %v485 = vsel %vm408, %v289, 0
        %v488 = vsel %vm408, %v290, 0
        %v491 = vsel %vm408, %v291, 0
        %v494 = vsel %vm408, %v292, 0
        %v497 = vsel %vm408, %v293, 0
        %v500 = vsel %vm408, %v294, 0
        %v503 = vsel %vm408, %v295, 0
        %505 = vmatprep.subr.mxu0 0.0
        %506 = vmatpush1.xpose.msra.mxu0 %v503
        %507 = vmatprep.subr.mxu0 0.0
        %508 = vmatpush1.xpose.msra.mxu0 %v500
        %509 = vmatprep.subr.mxu0 0.0
        %510 = vmatpush1.xpose.msra.mxu0 %v497
        %511 = vmatprep.subr.mxu0 0.0
        %512 = vmatpush1.xpose.msra.mxu0 %v494
        %513 = vmatprep.subr.mxu0 0.0
        %514 = vmatpush1.xpose.msra.mxu0 %v491
        %515 = vmatprep.subr.mxu0 0.0
        %516 = vmatpush1.xpose.msra.mxu0 %v488
        %517 = vmatprep.subr.mxu0 0.0
        %518 = vmatpush1.xpose.msra.mxu0 %v485
        %519 = vmatprep.subr.mxu0 0.0
        %520 = vmatpush1.xpose.msra.mxu0 %v482
        %521 = vmatprep.subr.mxu0 0.0
        %522 = vmatpush1.xpose.msra.mxu0 %v479
        %523 = vmatprep.subr.mxu0 0.0
        %524 = vmatpush1.xpose.msra.mxu0 %v476
        %525 = vmatprep.subr.mxu0 0.0
        %526 = vmatpush1.xpose.msra.mxu0 %v473
        %527 = vmatprep.subr.mxu0 0.0
        %528 = vmatpush1.xpose.msra.mxu0 %v470
        %529 = vmatprep.subr.mxu0 0.0
        %530 = vmatpush1.xpose.msra.mxu0 %v467
        %531 = vmatprep.subr.mxu0 0.0
        %532 = vmatpush1.xpose.msra.mxu0 %v464
        %533 = vmatprep.subr.mxu0 0.0
        %534 = vmatpush1.xpose.msra.mxu0 %v461
        %535 = vmatprep.subr.mxu0 0.0
        %536 = vmatpush1.xpose.msra.mxu0 %v458
        %537 = vmatprep.subr.mxu0 0.0
        %538 = vmatpush2.xpose.msra.mxu0 0.0
        %539 = vmatprep.subr.mxu0 0.0
        %540 = vmatpush2.xpose.msra.mxu0 0.0
        %541 = vmatprep.subr.mxu0 0.0
        %542 = vmatpush2.xpose.msra.mxu0 0.0
        %543 = vmatprep.subr.mxu0 0.0
        %544 = vmatpush2.xpose.msra.mxu0 0.0
        %545 = vmatprep.subr.mxu0 0.0
        %546 = vmatpush2.xpose.msra.mxu0 0.0
        %547 = vmatprep.subr.mxu0 0.0
        %548 = vmatpush2.xpose.msra.mxu0 0.0
        %549 = vmatprep.subr.mxu0 0.0
        %550 = vmatpush2.xpose.msra.mxu0 0.0
        %551 = vmatprep.subr.mxu0 0.0
        %552 = vmatpush2.xpose.msra.mxu0 0.0
        %553 = vmatprep.subr.mxu0 0.0
        %554 = vmatpush2.xpose.msra.mxu0 0.0
        %555 = vmatprep.subr.mxu0 0.0
        %556 = vmatpush2.xpose.msra.mxu0 0.0
        %557 = vmatprep.subr.mxu0 0.0
        %558 = vmatpush2.xpose.msra.mxu0 0.0
        %559 = vmatprep.subr.mxu0 0.0
        %560 = vmatpush2.xpose.msra.mxu0 0.0
        %561 = vmatprep.subr.mxu0 0.0
        %562 = vmatpush2.xpose.msra.mxu0 0.0
        %563 = vmatprep.subr.mxu0 0.0
        %564 = vmatpush2.xpose.msra.mxu0 0.0
        %565 = vmatprep.subr.mxu0 0.0
        %566 = vmatpush2.xpose.msra.mxu0 0.0
        %567 = vmatprep.subr.mxu0 0.0
        %568 = vmatpush2.xpose.msra.mxu0 0.0
        %569 = vmatprep.mubr.f32.mxu0 0.0
        %570 = vmatmul.mubr.f32.gmra.mxu0 %v410
        %v571 = vpop.f32.mrf.mxu0
        %v572 = vadd.f32 %v331, %v571
        %v573 = vpop.f32.mrf.mxu0
        %574 = vmatprep.mubr.f32.mxu0 0.0
        %575 = vmatmul.mubr.f32.gmra.mxu0 %v413
        %v576 = vpop.f32.mrf.mxu0
        %v577 = vadd.f32 %v336, %v576
        %v578 = vpop.f32.mrf.mxu0
        %579 = vmatprep.mubr.f32.mxu0 0.0
        %580 = vmatmul.mubr.f32.gmra.mxu0 %v416
        %v581 = vpop.f32.mrf.mxu0
        %v582 = vadd.f32 %v341, %v581
        %v583 = vpop.f32.mrf.mxu0
        %584 = vmatprep.mubr.f32.mxu0 0.0
        %585 = vmatmul.mubr.f32.gmra.mxu0 %v419
        %v586 = vpop.f32.mrf.mxu0
        %v587 = vadd.f32 %v346, %v586
        %v588 = vpop.f32.mrf.mxu0
        %589 = vmatprep.mubr.f32.mxu0 0.0
        %590 = vmatmul.mubr.f32.gmra.mxu0 %v422
        %v591 = vpop.f32.mrf.mxu0
        %v592 = vadd.f32 %v351, %v591
        %v593 = vpop.f32.mrf.mxu0
        %594 = vmatprep.mubr.f32.mxu0 0.0
        %595 = vmatmul.mubr.f32.gmra.mxu0 %v425
        %v596 = vpop.f32.mrf.mxu0
        %v597 = vadd.f32 %v356, %v596
        %v598 = vpop.f32.mrf.mxu0
        %599 = vmatprep.mubr.f32.mxu0 0.0
        %600 = vmatmul.mubr.f32.gmra.mxu0 %v428
        %v601 = vpop.f32.mrf.mxu0
        %v602 = vadd.f32 %v361, %v601
        %v603 = vpop.f32.mrf.mxu0
        %604 = vmatprep.mubr.f32.mxu0 0.0
        %605 = vmatmul.mubr.f32.gmra.mxu0 %v431
        %v606 = vpop.f32.mrf.mxu0
        %v607 = vadd.f32 %v366, %v606
        %v608 = vpop.f32.mrf.mxu0
        %609 = vmatprep.mubr.f32.mxu0 0.0
        %610 = vmatmul.mubr.f32.gmra.mxu0 %v434
        %v611 = vpop.f32.mrf.mxu0
        %v612 = vadd.f32 %v371, %v611
        %v613 = vpop.f32.mrf.mxu0
        %614 = vmatprep.mubr.f32.mxu0 0.0
        %615 = vmatmul.mubr.f32.gmra.mxu0 %v437
        %v616 = vpop.f32.mrf.mxu0
        %v617 = vadd.f32 %v376, %v616
        %v618 = vpop.f32.mrf.mxu0
        %619 = vmatprep.mubr.f32.mxu0 0.0
        %620 = vmatmul.mubr.f32.gmra.mxu0 %v440
        %v621 = vpop.f32.mrf.mxu0
        %v622 = vadd.f32 %v381, %v621
        %v623 = vpop.f32.mrf.mxu0
        %624 = vmatprep.mubr.f32.mxu0 0.0
        %625 = vmatmul.mubr.f32.gmra.mxu0 %v443
        %v626 = vpop.f32.mrf.mxu0
        %v627 = vadd.f32 %v386, %v626
        %v628 = vpop.f32.mrf.mxu0
        %629 = vmatprep.mubr.f32.mxu0 0.0
        %630 = vmatmul.mubr.f32.gmra.mxu0 %v446
        %v631 = vpop.f32.mrf.mxu0
        %v632 = vadd.f32 %v391, %v631
        %v633 = vpop.f32.mrf.mxu0
        %634 = vmatprep.mubr.f32.mxu0 0.0
        %635 = vmatmul.mubr.f32.gmra.mxu0 %v449
        %v636 = vpop.f32.mrf.mxu0
        %v637 = vadd.f32 %v396, %v636
        %v638 = vpop.f32.mrf.mxu0
        %639 = vmatprep.mubr.f32.mxu0 0.0
        %640 = vmatmul.mubr.f32.gmra.mxu0 %v452
        %v641 = vpop.f32.mrf.mxu0
        %v642 = vadd.f32 %v401, %v641
        %v643 = vpop.f32.mrf.mxu0
        %644 = vmatprep.mubr.f32.mxu0 0.0
        %645 = vmatmul.mubr.f32.gmra.mxu0 %v455
        %v646 = vpop.f32.mrf.mxu0
        %v647 = vadd.f32 %v406, %v646
        %v648 = vpop.f32.mrf.mxu0
        %649 = vdwg.mxu0
        %v650 = vmin.f32 %v572, 0.0
        %v651 = vmin.f32 %v577, 0.0
        %v652 = vmin.f32 %v582, 0.0
        %v653 = vmin.f32 %v587, 0.0
        %v654 = vmin.f32 %v592, 0.0
        %v655 = vmin.f32 %v597, 0.0
        %v656 = vmin.f32 %v602, 0.0
        %v657 = vmin.f32 %v607, 0.0
        %v658 = vmin.f32 %v612, 0.0
        %v659 = vmin.f32 %v617, 0.0
        %v660 = vmin.f32 %v622, 0.0
        %v661 = vmin.f32 %v627, 0.0
        %v662 = vmin.f32 %v632, 0.0
        %v663 = vmin.f32 %v637, 0.0
        %v664 = vmin.f32 %v642, 0.0
        %v665 = vmin.f32 %v647, 0.0
        %v666 = vmul.f32 %v650, 10.0
        %v667 = vmul.f32 %v651, 10.0
        %v668 = vmul.f32 %v652, 10.0
        %v669 = vmul.f32 %v653, 10.0
        %v670 = vmul.f32 %v654, 10.0
        %v671 = vmul.f32 %v655, 10.0
        %v672 = vmul.f32 %v656, 10.0
        %v673 = vmul.f32 %v657, 10.0
        %v674 = vmul.f32 %v658, 10.0
        %v675 = vmul.f32 %v659, 10.0
        %v676 = vmul.f32 %v660, 10.0
        %v677 = vmul.f32 %v661, 10.0
        %v678 = vmul.f32 %v662, 10.0
        %v679 = vmul.f32 %v663, 10.0
        %v680 = vmul.f32 %v664, 10.0
        %v681 = vmul.f32 %v665, 10.0
        %v682 = vmul.f32 %v666, 1.442695
        %v683 = vpow.pop %v682
        %v684 = vmul.f32 %v667, 1.442695
        %v685 = vpow.pop %v684
        %v686 = vmul.f32 %v668, 1.442695
        %v687 = vpow.pop %v686
        %v688 = vmul.f32 %v669, 1.442695
        %v689 = vpow.pop %v688
        %v690 = vmul.f32 %v670, 1.442695
        %v691 = vpow.pop %v690
        %v692 = vmul.f32 %v671, 1.442695
        %v693 = vpow.pop %v692
        %v694 = vmul.f32 %v672, 1.442695
        %v695 = vpow.pop %v694
        %v696 = vmul.f32 %v673, 1.442695
        %v697 = vpow.pop %v696
        %v698 = vmul.f32 %v674, 1.442695
        %v699 = vpow.pop %v698
        %v700 = vmul.f32 %v675, 1.442695
        %v701 = vpow.pop %v700
        %v702 = vmul.f32 %v676, 1.442695
        %v703 = vpow.pop %v702
        %v704 = vmul.f32 %v677, 1.442695
        %v705 = vpow.pop %v704
        %v706 = vmul.f32 %v678, 1.442695
        %v707 = vpow.pop %v706
        %v708 = vmul.f32 %v679, 1.442695
        %v709 = vpow.pop %v708
        %v710 = vmul.f32 %v680, 1.442695
        %v711 = vpow.pop %v710
        %v712 = vmul.f32 %v681, 1.442695
        %v713 = vpow.pop %v712
        %v714 = vsub.f32 %v683, 1.0
        %v715 = vsub.f32 %v685, 1.0
        %v716 = vsub.f32 %v687, 1.0
        %v717 = vsub.f32 %v689, 1.0
        %v718 = vsub.f32 %v691, 1.0
        %v719 = vsub.f32 %v693, 1.0
        %v720 = vsub.f32 %v695, 1.0
        %v721 = vsub.f32 %v697, 1.0
        %v722 = vsub.f32 %v699, 1.0
        %v723 = vsub.f32 %v701, 1.0
        %v724 = vsub.f32 %v703, 1.0
        %v725 = vsub.f32 %v705, 1.0
        %v726 = vsub.f32 %v707, 1.0
        %v727 = vsub.f32 %v709, 1.0
        %v728 = vsub.f32 %v711, 1.0
        %v729 = vsub.f32 %v713, 1.0
        %v730 = vmul.f32 %v666, 0.16666667
        %v731 = vmul.f32 %v667, 0.16666667
        %v732 = vmul.f32 %v668, 0.16666667
        %v733 = vmul.f32 %v669, 0.16666667
        %v734 = vmul.f32 %v670, 0.16666667
        %v735 = vmul.f32 %v671, 0.16666667
        %v736 = vmul.f32 %v672, 0.16666667
        %v737 = vmul.f32 %v673, 0.16666667
        %v738 = vmul.f32 %v674, 0.16666667
        %v739 = vmul.f32 %v675, 0.16666667
        %v740 = vmul.f32 %v676, 0.16666667
        %v741 = vmul.f32 %v677, 0.16666667
        %v742 = vmul.f32 %v678, 0.16666667
        %v743 = vmul.f32 %v679, 0.16666667
        %v744 = vmul.f32 %v680, 0.16666667
        %v745 = vmul.f32 %v681, 0.16666667
        %v746 = vadd.f32 %v730, 0.5
        %v747 = vadd.f32 %v731, 0.5
        %v748 = vadd.f32 %v732, 0.5
        %v749 = vadd.f32 %v733, 0.5
        %v750 = vadd.f32 %v734, 0.5
        %v751 = vadd.f32 %v735, 0.5
        %v752 = vadd.f32 %v736, 0.5
        %v753 = vadd.f32 %v737, 0.5
        %v754 = vadd.f32 %v738, 0.5
        %v755 = vadd.f32 %v739, 0.5
        %v756 = vadd.f32 %v740, 0.5
        %v757 = vadd.f32 %v741, 0.5
        %v758 = vadd.f32 %v742, 0.5
        %v759 = vadd.f32 %v743, 0.5
        %v760 = vadd.f32 %v744, 0.5
        %v761 = vadd.f32 %v745, 0.5
        %v762 = vmul.f32 %v666, %v746
        %v763 = vmul.f32 %v667, %v747
        %v764 = vmul.f32 %v668, %v748
        %v765 = vmul.f32 %v669, %v749
        %v766 = vmul.f32 %v670, %v750
        %v767 = vmul.f32 %v671, %v751
        %v768 = vmul.f32 %v672, %v752
        %v769 = vmul.f32 %v673, %v753
        %v770 = vmul.f32 %v674, %v754
        %v771 = vmul.f32 %v675, %v755
        %v772 = vmul.f32 %v676, %v756
        %v773 = vmul.f32 %v677, %v757
        %v774 = vmul.f32 %v678, %v758
        %v775 = vmul.f32 %v679, %v759
        %v776 = vmul.f32 %v680, %v760
        %v777 = vmul.f32 %v681, %v761
        %v778 = vadd.f32 %v762, 1.0
        %v779 = vadd.f32 %v763, 1.0
        %v780 = vadd.f32 %v764, 1.0
        %v781 = vadd.f32 %v765, 1.0
        %v782 = vadd.f32 %v766, 1.0
        %v783 = vadd.f32 %v767, 1.0
        %v784 = vadd.f32 %v768, 1.0
        %v785 = vadd.f32 %v769, 1.0
        %v786 = vadd.f32 %v770, 1.0
        %v787 = vadd.f32 %v771, 1.0
        %v788 = vadd.f32 %v772, 1.0
        %v789 = vadd.f32 %v773, 1.0
        %v790 = vadd.f32 %v774, 1.0
        %v791 = vadd.f32 %v775, 1.0
        %v792 = vadd.f32 %v776, 1.0
        %v793 = vadd.f32 %v777, 1.0
        %v794 = vmul.f32 %v666, %v778
        %v795 = vmul.f32 %v667, %v779
        %v796 = vmul.f32 %v668, %v780
        %v797 = vmul.f32 %v669, %v781
        %v798 = vmul.f32 %v670, %v782
        %v799 = vmul.f32 %v671, %v783
        %v800 = vmul.f32 %v672, %v784
        %v801 = vmul.f32 %v673, %v785
        %v802 = vmul.f32 %v674, %v786
        %v803 = vmul.f32 %v675, %v787
        %v804 = vmul.f32 %v676, %v788
        %v805 = vmul.f32 %v677, %v789
        %v806 = vmul.f32 %v678, %v790
        %v807 = vmul.f32 %v679, %v791
        %v808 = vmul.f32 %v680, %v792
        %v809 = vmul.f32 %v681, %v793
        %vm810 = vcmp.gt.f32.partialorder %v666, -0.04
        %vm811 = vcmp.gt.f32.partialorder %v667, -0.04
        %vm812 = vcmp.gt.f32.partialorder %v668, -0.04
        %vm813 = vcmp.gt.f32.partialorder %v669, -0.04
        %vm814 = vcmp.gt.f32.partialorder %v670, -0.04
        %vm815 = vcmp.gt.f32.partialorder %v671, -0.04
        %vm816 = vcmp.gt.f32.partialorder %v672, -0.04
        %vm817 = vcmp.gt.f32.partialorder %v673, -0.04
        %vm818 = vcmp.gt.f32.partialorder %v674, -0.04
        %vm819 = vcmp.gt.f32.partialorder %v675, -0.04
        %vm820 = vcmp.gt.f32.partialorder %v676, -0.04
        %vm821 = vcmp.gt.f32.partialorder %v677, -0.04
        %vm822 = vcmp.gt.f32.partialorder %v678, -0.04
        %vm823 = vcmp.gt.f32.partialorder %v679, -0.04
        %vm824 = vcmp.gt.f32.partialorder %v680, -0.04
        %vm825 = vcmp.gt.f32.partialorder %v681, -0.04
        %v826 = vsel %vm810, %v794, %v714
        %v827 = vsel %vm811, %v795, %v715
        %v828 = vsel %vm812, %v796, %v716
        %v829 = vsel %vm813, %v797, %v717
        %v830 = vsel %vm814, %v798, %v718
        %v831 = vsel %vm815, %v799, %v719
        %v832 = vsel %vm816, %v800, %v720
        %v833 = vsel %vm817, %v801, %v721
        %v834 = vsel %vm818, %v802, %v722
        %v835 = vsel %vm819, %v803, %v723
        %v836 = vsel %vm820, %v804, %v724
        %v837 = vsel %vm821, %v805, %v725
        %v838 = vsel %vm822, %v806, %v726
        %v839 = vsel %vm823, %v807, %v727
        %v840 = vsel %vm824, %v808, %v728
        %v841 = vsel %vm825, %v809, %v729
        %vm842 = vcmp.gt.f32.partialorder %v572, 0.0
        %vm843 = vcmp.gt.f32.partialorder %v577, 0.0
        %vm844 = vcmp.gt.f32.partialorder %v582, 0.0
        %vm845 = vcmp.gt.f32.partialorder %v587, 0.0
        %vm846 = vcmp.gt.f32.partialorder %v592, 0.0
        %vm847 = vcmp.gt.f32.partialorder %v597, 0.0
        %vm848 = vcmp.gt.f32.partialorder %v602, 0.0
        %vm849 = vcmp.gt.f32.partialorder %v607, 0.0
        %vm850 = vcmp.gt.f32.partialorder %v612, 0.0
        %vm851 = vcmp.gt.f32.partialorder %v617, 0.0
        %vm852 = vcmp.gt.f32.partialorder %v622, 0.0
        %vm853 = vcmp.gt.f32.partialorder %v627, 0.0
        %vm854 = vcmp.gt.f32.partialorder %v632, 0.0
        %vm855 = vcmp.gt.f32.partialorder %v637, 0.0
        %vm856 = vcmp.gt.f32.partialorder %v642, 0.0
        %vm857 = vcmp.gt.f32.partialorder %v647, 0.0
        %v858 = vmul.f32 %v826, 0.1
        %v859 = vmul.f32 %v827, 0.1
        %v860 = vmul.f32 %v828, 0.1
        %v861 = vmul.f32 %v829, 0.1
        %v862 = vmul.f32 %v830, 0.1
        %v863 = vmul.f32 %v831, 0.1
        %v864 = vmul.f32 %v832, 0.1
        %v865 = vmul.f32 %v833, 0.1
        %v866 = vmul.f32 %v834, 0.1
        %v867 = vmul.f32 %v835, 0.1
        %v868 = vmul.f32 %v836, 0.1
        %v869 = vmul.f32 %v837, 0.1
        %v870 = vmul.f32 %v838, 0.1
        %v871 = vmul.f32 %v839, 0.1
        %v872 = vmul.f32 %v840, 0.1
        %v873 = vmul.f32 %v841, 0.1
        %v874 = vsel %vm842, %v572, %v858
        %v875 = vsel %vm843, %v577, %v859
        %v876 = vsel %vm844, %v582, %v860
        %v877 = vsel %vm845, %v587, %v861
        %v878 = vsel %vm846, %v592, %v862
        %v879 = vsel %vm847, %v597, %v863
        %v880 = vsel %vm848, %v602, %v864
        %v881 = vsel %vm849, %v607, %v865
        %v882 = vsel %vm850, %v612, %v866
        %v883 = vsel %vm851, %v617, %v867
        %v884 = vsel %vm852, %v622, %v868
        %v885 = vsel %vm853, %v627, %v869
        %v886 = vsel %vm854, %v632, %v870
        %v887 = vsel %vm855, %v637, %v871
        %v888 = vsel %vm856, %v642, %v872
        %v889 = vsel %vm857, %v647, %v873
        %v890 = vld [vmem:[%s3] sm:$0xff]
        %v891 = vld [vmem:[%s3 + $0x8] sm:$0xff]
        %v892 = vld [vmem:[%s3 + $0x10] sm:$0xff]
        %v893 = vld [vmem:[%s3 + $0x18] sm:$0xff]
        %v894 = vld [vmem:[%s3 + $0x20] sm:$0xff]
        %v895 = vld [vmem:[%s3 + $0x28] sm:$0xff]
        %v896 = vld [vmem:[%s3 + $0x30] sm:$0xff]
        %v897 = vld [vmem:[%s3 + $0x38] sm:$0xff]
        %v898 = vld [vmem:[%s4] sm:$0xff]
        %v899 = vld [vmem:[%s4 + $0x8] sm:$0xff]
        %v900 = vld [vmem:[%s4 + $0x10] sm:$0xff]
        %v901 = vld [vmem:[%s4 + $0x18] sm:$0xff]
        %v902 = vld [vmem:[%s4 + $0x20] sm:$0xff]
        %v903 = vld [vmem:[%s4 + $0x28] sm:$0xff]
        %v904 = vld [vmem:[%s4 + $0x30] sm:$0xff]
        %v905 = vld [vmem:[%s4 + $0x38] sm:$0xff]
        %907 = vset.pattern.permute.xlu0 0
        %908 = vperm.xlu0 %907, %v898
        %v909 = vpop.permute.xlu0 %908
        %912 = vset.pattern.permute.xlu0 0
        %913 = vperm.xlu0 %912, %v899
        %v914 = vpop.permute.xlu0 %913
        %917 = vset.pattern.permute.xlu0 0
        %918 = vperm.xlu0 %917, %v900
        %v919 = vpop.permute.xlu0 %918
        %922 = vset.pattern.permute.xlu0 0
        %923 = vperm.xlu0 %922, %v901
        %v924 = vpop.permute.xlu0 %923
        %927 = vset.pattern.permute.xlu0 0
        %928 = vperm.xlu0 %927, %v902
        %v929 = vpop.permute.xlu0 %928
        %932 = vset.pattern.permute.xlu0 0
        %933 = vperm.xlu0 %932, %v903
        %v934 = vpop.permute.xlu0 %933
        %937 = vset.pattern.permute.xlu0 0
        %938 = vperm.xlu0 %937, %v904
        %v939 = vpop.permute.xlu0 %938
        %942 = vset.pattern.permute.xlu0 0
        %943 = vperm.xlu0 %942, %v905
        %v944 = vpop.permute.xlu0 %943
        %946 = vmatprep.subr.mxu0 0.0
        %947 = vmatpush1.msra.mxu0 %v889
        %948 = vmatprep.subr.mxu0 0.0
        %949 = vmatpush1.msra.mxu0 %v888
        %950 = vmatprep.subr.mxu0 0.0
        %951 = vmatpush1.msra.mxu0 %v887
        %952 = vmatprep.subr.mxu0 0.0
        %953 = vmatpush1.msra.mxu0 %v886
        %954 = vmatprep.subr.mxu0 0.0
        %955 = vmatpush1.msra.mxu0 %v885
        %956 = vmatprep.subr.mxu0 0.0
        %957 = vmatpush1.msra.mxu0 %v884
        %958 = vmatprep.subr.mxu0 0.0
        %959 = vmatpush1.msra.mxu0 %v883
        %960 = vmatprep.subr.mxu0 0.0
        %961 = vmatpush1.msra.mxu0 %v882
        %962 = vmatprep.subr.mxu0 0.0
        %963 = vmatpush1.msra.mxu0 %v881
        %964 = vmatprep.subr.mxu0 0.0
        %965 = vmatpush1.msra.mxu0 %v880
        %966 = vmatprep.subr.mxu0 0.0
        %967 = vmatpush1.msra.mxu0 %v879
        %968 = vmatprep.subr.mxu0 0.0
        %969 = vmatpush1.msra.mxu0 %v878
        %970 = vmatprep.subr.mxu0 0.0
        %971 = vmatpush1.msra.mxu0 %v877
        %972 = vmatprep.subr.mxu0 0.0
        %973 = vmatpush1.msra.mxu0 %v876
        %974 = vmatprep.subr.mxu0 0.0
        %975 = vmatpush1.msra.mxu0 %v875
        %976 = vmatprep.subr.mxu0 0.0
        %977 = vmatpush1.msra.mxu0 %v874
        %978 = vmatprep.subr.mxu0 0.0
        %979 = vmatpush2.msra.mxu0 0.0
        %980 = vmatprep.subr.mxu0 0.0
        %981 = vmatpush2.msra.mxu0 0.0
        %982 = vmatprep.subr.mxu0 0.0
        %983 = vmatpush2.msra.mxu0 0.0
        %984 = vmatprep.subr.mxu0 0.0
        %985 = vmatpush2.msra.mxu0 0.0
        %986 = vmatprep.subr.mxu0 0.0
        %987 = vmatpush2.msra.mxu0 0.0
        %988 = vmatprep.subr.mxu0 0.0
        %989 = vmatpush2.msra.mxu0 0.0
        %990 = vmatprep.subr.mxu0 0.0
        %991 = vmatpush2.msra.mxu0 0.0
        %992 = vmatprep.subr.mxu0 0.0
        %993 = vmatpush2.msra.mxu0 0.0
        %994 = vmatprep.subr.mxu0 0.0
        %995 = vmatpush2.msra.mxu0 0.0
        %996 = vmatprep.subr.mxu0 0.0
        %997 = vmatpush2.msra.mxu0 0.0
        %998 = vmatprep.subr.mxu0 0.0
        %999 = vmatpush2.msra.mxu0 0.0
        %1000 = vmatprep.subr.mxu0 0.0
        %1001 = vmatpush2.msra.mxu0 0.0
        %1002 = vmatprep.subr.mxu0 0.0
        %1003 = vmatpush2.msra.mxu0 0.0
        %1004 = vmatprep.subr.mxu0 0.0
        %1005 = vmatpush2.msra.mxu0 0.0
        %1006 = vmatprep.subr.mxu0 0.0
        %1007 = vmatpush2.msra.mxu0 0.0
        %1008 = vmatprep.subr.mxu0 0.0
        %1009 = vmatpush2.msra.mxu0 0.0
        %1010 = vmatprep.mubr.f32.mxu0 0.0
        %1011 = vmatmul.mubr.f32.gmra.mxu0 %v890
        %v1012 = vpop.f32.mrf.mxu0
        %v1013 = vadd.f32 %v909, %v1012
        %v1014 = vpop.f32.mrf.mxu0
        %1015 = vmatprep.mubr.f32.mxu0 0.0
        %1016 = vmatmul.mubr.f32.gmra.mxu0 %v891
        %v1017 = vpop.f32.mrf.mxu0
        %v1018 = vadd.f32 %v914, %v1017
        %v1019 = vpop.f32.mrf.mxu0
        %1020 = vmatprep.mubr.f32.mxu0 0.0
        %1021 = vmatmul.mubr.f32.gmra.mxu0 %v892
        %v1022 = vpop.f32.mrf.mxu0
        %v1023 = vadd.f32 %v919, %v1022
        %v1024 = vpop.f32.mrf.mxu0
        %1025 = vmatprep.mubr.f32.mxu0 0.0
        %1026 = vmatmul.mubr.f32.gmra.mxu0 %v893
        %v1027 = vpop.f32.mrf.mxu0
        %v1028 = vadd.f32 %v924, %v1027
        %v1029 = vpop.f32.mrf.mxu0
        %1030 = vmatprep.mubr.f32.mxu0 0.0
        %1031 = vmatmul.mubr.f32.gmra.mxu0 %v894
        %v1032 = vpop.f32.mrf.mxu0
        %v1033 = vadd.f32 %v929, %v1032
        %v1034 = vpop.f32.mrf.mxu0
        %1035 = vmatprep.mubr.f32.mxu0 0.0
        %1036 = vmatmul.mubr.f32.gmra.mxu0 %v895
        %v1037 = vpop.f32.mrf.mxu0
        %v1038 = vadd.f32 %v934, %v1037
        %v1039 = vpop.f32.mrf.mxu0
        %1040 = vmatprep.mubr.f32.mxu0 0.0
        %1041 = vmatmul.mubr.f32.gmra.mxu0 %v896
        %v1042 = vpop.f32.mrf.mxu0
        %v1043 = vadd.f32 %v939, %v1042
        %v1044 = vpop.f32.mrf.mxu0
        %1045 = vmatprep.mubr.f32.mxu0 0.0
        %1046 = vmatmul.mubr.f32.gmra.mxu0 %v897
        %v1047 = vpop.f32.mrf.mxu0
        %v1048 = vadd.f32 %v944, %v1047
        %v1049 = vpop.f32.mrf.mxu0
        %1050 = vdwg.mxu0
        %v1051 = vmin.f32 %v1013, 0.0
        %v1052 = vmin.f32 %v1018, 0.0
        %v1053 = vmin.f32 %v1023, 0.0
        %v1054 = vmin.f32 %v1028, 0.0
        %v1055 = vmin.f32 %v1033, 0.0
        %v1056 = vmin.f32 %v1038, 0.0
        %v1057 = vmin.f32 %v1043, 0.0
        %v1058 = vmin.f32 %v1048, 0.0
        %v1059 = vmul.f32 %v1051, 10.0
        %v1060 = vmul.f32 %v1052, 10.0
        %v1061 = vmul.f32 %v1053, 10.0
        %v1062 = vmul.f32 %v1054, 10.0
        %v1063 = vmul.f32 %v1055, 10.0
        %v1064 = vmul.f32 %v1056, 10.0
        %v1065 = vmul.f32 %v1057, 10.0
        %v1066 = vmul.f32 %v1058, 10.0
        %v1067 = vmul.f32 %v1059, 1.442695
        %v1068 = vpow.pop %v1067
        %v1069 = vmul.f32 %v1060, 1.442695
        %v1070 = vpow.pop %v1069
        %v1071 = vmul.f32 %v1061, 1.442695
        %v1072 = vpow.pop %v1071
        %v1073 = vmul.f32 %v1062, 1.442695
        %v1074 = vpow.pop %v1073
        %v1075 = vmul.f32 %v1063, 1.442695
        %v1076 = vpow.pop %v1075
        %v1077 = vmul.f32 %v1064, 1.442695
        %v1078 = vpow.pop %v1077
        %v1079 = vmul.f32 %v1065, 1.442695
        %v1080 = vpow.pop %v1079
        %v1081 = vmul.f32 %v1066, 1.442695
        %v1082 = vpow.pop %v1081
        %v1083 = vsub.f32 %v1068, 1.0
        %v1084 = vsub.f32 %v1070, 1.0
        %v1085 = vsub.f32 %v1072, 1.0
        %v1086 = vsub.f32 %v1074, 1.0
        %v1087 = vsub.f32 %v1076, 1.0
        %v1088 = vsub.f32 %v1078, 1.0
        %v1089 = vsub.f32 %v1080, 1.0
        %v1090 = vsub.f32 %v1082, 1.0
        %v1091 = vmul.f32 %v1059, 0.16666667
        %v1092 = vmul.f32 %v1060, 0.16666667
        %v1093 = vmul.f32 %v1061, 0.16666667
        %v1094 = vmul.f32 %v1062, 0.16666667
        %v1095 = vmul.f32 %v1063, 0.16666667
        %v1096 = vmul.f32 %v1064, 0.16666667
        %v1097 = vmul.f32 %v1065, 0.16666667
        %v1098 = vmul.f32 %v1066, 0.16666667
        %v1099 = vadd.f32 %v1091, 0.5
        %v1100 = vadd.f32 %v1092, 0.5
        %v1101 = vadd.f32 %v1093, 0.5
        %v1102 = vadd.f32 %v1094, 0.5
        %v1103 = vadd.f32 %v1095, 0.5
        %v1104 = vadd.f32 %v1096, 0.5
        %v1105 = vadd.f32 %v1097, 0.5
        %v1106 = vadd.f32 %v1098, 0.5
        %v1107 = vmul.f32 %v1059, %v1099
        %v1108 = vmul.f32 %v1060, %v1100
        %v1109 = vmul.f32 %v1061, %v1101
        %v1110 = vmul.f32 %v1062, %v1102
        %v1111 = vmul.f32 %v1063, %v1103
        %v1112 = vmul.f32 %v1064, %v1104
        %v1113 = vmul.f32 %v1065, %v1105
        %v1114 = vmul.f32 %v1066, %v1106
        %v1115 = vadd.f32 %v1107, 1.0
        %v1116 = vadd.f32 %v1108, 1.0
        %v1117 = vadd.f32 %v1109, 1.0
        %v1118 = vadd.f32 %v1110, 1.0
        %v1119 = vadd.f32 %v1111, 1.0
        %v1120 = vadd.f32 %v1112, 1.0
        %v1121 = vadd.f32 %v1113, 1.0
        %v1122 = vadd.f32 %v1114, 1.0
        %v1123 = vmul.f32 %v1059, %v1115
        %v1124 = vmul.f32 %v1060, %v1116
        %v1125 = vmul.f32 %v1061, %v1117
        %v1126 = vmul.f32 %v1062, %v1118
        %v1127 = vmul.f32 %v1063, %v1119
        %v1128 = vmul.f32 %v1064, %v1120
        %v1129 = vmul.f32 %v1065, %v1121
        %v1130 = vmul.f32 %v1066, %v1122
        %vm1131 = vcmp.gt.f32.partialorder %v1059, -0.04
        %vm1132 = vcmp.gt.f32.partialorder %v1060, -0.04
        %vm1133 = vcmp.gt.f32.partialorder %v1061, -0.04
        %vm1134 = vcmp.gt.f32.partialorder %v1062, -0.04
        %vm1135 = vcmp.gt.f32.partialorder %v1063, -0.04
        %vm1136 = vcmp.gt.f32.partialorder %v1064, -0.04
        %vm1137 = vcmp.gt.f32.partialorder %v1065, -0.04
        %vm1138 = vcmp.gt.f32.partialorder %v1066, -0.04
        %v1139 = vsel %vm1131, %v1123, %v1083
        %v1140 = vsel %vm1132, %v1124, %v1084
        %v1141 = vsel %vm1133, %v1125, %v1085
        %v1142 = vsel %vm1134, %v1126, %v1086
        %v1143 = vsel %vm1135, %v1127, %v1087
        %v1144 = vsel %vm1136, %v1128, %v1088
        %v1145 = vsel %vm1137, %v1129, %v1089
        %v1146 = vsel %vm1138, %v1130, %v1090
        %vm1147 = vcmp.gt.f32.partialorder %v1013, 0.0
        %vm1148 = vcmp.gt.f32.partialorder %v1018, 0.0
        %vm1149 = vcmp.gt.f32.partialorder %v1023, 0.0
        %vm1150 = vcmp.gt.f32.partialorder %v1028, 0.0
        %vm1151 = vcmp.gt.f32.partialorder %v1033, 0.0
        %vm1152 = vcmp.gt.f32.partialorder %v1038, 0.0
        %vm1153 = vcmp.gt.f32.partialorder %v1043, 0.0
        %vm1154 = vcmp.gt.f32.partialorder %v1048, 0.0
        %v1155 = vmul.f32 %v1139, 0.1
        %v1156 = vmul.f32 %v1140, 0.1
        %v1157 = vmul.f32 %v1141, 0.1
        %v1158 = vmul.f32 %v1142, 0.1
        %v1159 = vmul.f32 %v1143, 0.1
        %v1160 = vmul.f32 %v1144, 0.1
        %v1161 = vmul.f32 %v1145, 0.1
        %v1162 = vmul.f32 %v1146, 0.1
        %v1163 = vsel %vm1147, %v1013, %v1155
        %v1164 = vsel %vm1148, %v1018, %v1156
        %v1165 = vsel %vm1149, %v1023, %v1157
        %v1166 = vsel %vm1150, %v1028, %v1158
        %v1167 = vsel %vm1151, %v1033, %v1159
        %v1168 = vsel %vm1152, %v1038, %v1160
        %v1169 = vsel %vm1153, %v1043, %v1161
        %v1170 = vsel %vm1154, %v1048, %v1162
        %v1171 = vld [vmem:[%s5] sm:$0x1]
        %v1172 = vld [vmem:[#allocation2] sm:$0x1]
        %1174 = vset.pattern.permute.xlu0 0
        %1175 = vperm.xlu0 %1174, %v1172
        %v1176 = vpop.permute.xlu0 %1175
        %v1178 = vlaneseq
        %v1179 = vshrl.u32 %v1178, 7
        %v1180 = vsub.s32 0, %v1179
        %v1181 = vrot.slane %v1176, %v1180
        %vm1182 = vcmask 523264
        %v1184 = vsel %vm1182, %v1171, 0
        %1186 = vmatprep.subr.mxu0 0.0
        %1187 = vmatpush1.msra.mxu0 0.0
        %1188 = vmatprep.subr.mxu0 0.0
        %1189 = vmatpush1.msra.mxu0 0.0
        %1190 = vmatprep.subr.mxu0 0.0
        %1191 = vmatpush1.msra.mxu0 0.0
        %1192 = vmatprep.subr.mxu0 0.0
        %1193 = vmatpush1.msra.mxu0 0.0
        %1194 = vmatprep.subr.mxu0 0.0
        %1195 = vmatpush1.msra.mxu0 0.0
        %1196 = vmatprep.subr.mxu0 0.0
        %1197 = vmatpush1.msra.mxu0 0.0
        %1198 = vmatprep.subr.mxu0 0.0
        %1199 = vmatpush1.msra.mxu0 0.0
        %1200 = vmatprep.subr.mxu0 0.0
        %1201 = vmatpush1.msra.mxu0 0.0
        %1202 = vmatprep.subr.mxu0 0.0
        %1203 = vmatpush1.msra.mxu0 %v1170
        %1204 = vmatprep.subr.mxu0 0.0
        %1205 = vmatpush1.msra.mxu0 %v1169
        %1206 = vmatprep.subr.mxu0 0.0
        %1207 = vmatpush1.msra.mxu0 %v1168
        %1208 = vmatprep.subr.mxu0 0.0
        %1209 = vmatpush1.msra.mxu0 %v1167
        %1210 = vmatprep.subr.mxu0 0.0
        %1211 = vmatpush1.msra.mxu0 %v1166
        %1212 = vmatprep.subr.mxu0 0.0
        %1213 = vmatpush1.msra.mxu0 %v1165
        %1214 = vmatprep.subr.mxu0 0.0
        %1215 = vmatpush1.msra.mxu0 %v1164
        %1216 = vmatprep.subr.mxu0 0.0
        %1217 = vmatpush1.msra.mxu0 %v1163
        %1218 = vmatprep.subr.mxu0 0.0
        %1219 = vmatpush2.msra.mxu0 0.0
        %1220 = vmatprep.subr.mxu0 0.0
        %1221 = vmatpush2.msra.mxu0 0.0
        %1222 = vmatprep.subr.mxu0 0.0
        %1223 = vmatpush2.msra.mxu0 0.0
        %1224 = vmatprep.subr.mxu0 0.0
        %1225 = vmatpush2.msra.mxu0 0.0
        %1226 = vmatprep.subr.mxu0 0.0
        %1227 = vmatpush2.msra.mxu0 0.0
        %1228 = vmatprep.subr.mxu0 0.0
        %1229 = vmatpush2.msra.mxu0 0.0
        %1230 = vmatprep.subr.mxu0 0.0
        %1231 = vmatpush2.msra.mxu0 0.0
        %1232 = vmatprep.subr.mxu0 0.0
        %1233 = vmatpush2.msra.mxu0 0.0
        %1234 = vmatprep.subr.mxu0 0.0
        %1235 = vmatpush2.msra.mxu0 0.0
        %1236 = vmatprep.subr.mxu0 0.0
        %1237 = vmatpush2.msra.mxu0 0.0
        %1238 = vmatprep.subr.mxu0 0.0
        %1239 = vmatpush2.msra.mxu0 0.0
        %1240 = vmatprep.subr.mxu0 0.0
        %1241 = vmatpush2.msra.mxu0 0.0
        %1242 = vmatprep.subr.mxu0 0.0
        %1243 = vmatpush2.msra.mxu0 0.0
        %1244 = vmatprep.subr.mxu0 0.0
        %1245 = vmatpush2.msra.mxu0 0.0
        %1246 = vmatprep.subr.mxu0 0.0
        %1247 = vmatpush2.msra.mxu0 0.0
        %1248 = vmatprep.subr.mxu0 0.0
        %1249 = vmatpush2.msra.mxu0 0.0
        %1250 = vmatprep.mubr.f32.mxu0 0.0
        %1251 = vmatmul.mubr.f32.gmra.mxu0 %v1184
        %v1252 = vpop.f32.mrf.mxu0
        %v1253 = vadd.f32 %v1181, %v1252
        %v1254 = vpop.f32.mrf.mxu0
        %1255 = vdwg.mxu0
        %1256 = vst [vmem:[%s273] sm:$0x1] %v1253
        %s1257 = sand.u32 %s183, 1
        %s1258 = scalar_lea.sflag [#allocation4], %s1257
        %s1259 = sand.u32 %s183, 1
        %s1260 = scalar_lea.vmem [#allocation3], %s1259
        // Predicated region
        $region49: #{tpu_custom_call.1} parent=47 // pred_check
          %p1261 = pneg %p193
        $region50: #{tpu_custom_call.1} parent=47 // pred_check_branch
          %1263 = sbr.rel (%p1261) target = $region52
        $region51: #{tpu_custom_call.1} parent=47 // pred_region
          %s1265 = ssub.s32 16, 16
          %1266 = vsyncadd %s1258, %s1265
          %s1267 = smul.addr %s23, 16
          %s1268 = scalar_lea.hbm %s7, %s1267
          %s1270 = sshll.u32 %s1260, 4
          %s1271 = int_to_ptr.vmem [resolvable:$true] %s1270
          %1273 = dma.vmem_to_hbm [thread:$0]  %s1271, 16, %s1268, %s1258
        $region52: #{tpu_custom_call.1} parent=47 // pred_fallthru
          _
      $region48: #{tpu_custom_call.1} parent=5 // pred_fallthru
        _
      %p1274 = scmp.le.s32.totalorder 2, %s18
      // Predicated region
      $region53: #{tpu_custom_call.1} parent=5 // pred_check
        %p1275 = pneg %p1274
      $region54: #{tpu_custom_call.1} parent=5 // pred_check_branch
        %1277 = sbr.rel (%p1275) target = $region56
      $region55: #{tpu_custom_call.1} parent=5 // pred_region
        %s1278 = ssub.s32 %s18, 2
        // Predicated region
        $region57: #{tpu_custom_call.1} parent=55 // pred_check
          %p1279 = pneg %p199
        $region58: #{tpu_custom_call.1} parent=55 // pred_check_branch
          %1281 = sbr.rel (%p1279) target = $region60
        $region59: #{tpu_custom_call.1} parent=55 // pred_region
          %s1282 = sand.u32 %s184, 1
          %s1283 = scalar_lea.sflag [#allocation4], %s1282
          %s1284 = sand.u32 %s184, 1
          %s1285 = scalar_lea.vmem [#allocation3], %s1284
          %1286 = dma.done %s1283, 16
        $region60: #{tpu_custom_call.1} parent=55 // pred_fallthru
          _
      $region56: #{tpu_custom_call.1} parent=5 // pred_fallthru
        _
    $region6: #{tpu_custom_call.1} parent=1 // loop_footer
      %s22 = sadd.s32 1, %s18
    $region7: #{tpu_custom_call.1} parent=1 // loop_footer_branch
      %17 = sbr.rel target = $region3
    $region8: #{tpu_custom_call.1} parent=1 // loop_exit
      _
    %1287 = vsyncpa [#allocation4], 1
    %s1288 = scalar_lea.sflag [#allocation4], 1
    %1289 = vsyncpa %s1288, 1

// kernel: tpu_custom_call.1
$region0: #{tpu_custom_call.1}
  #allocation0 [shape = 'u32[]', space=smem, size = 0x4, offset = 0x4, fixed_abs, tag = 'smem constant byte address 0x4 - core index']
  #allocation1 [shape = 'u32[144,128]{1,0:T(1,128)}', space=vmem, size = 0x12000, scoped, tag = 'internal scratch']
  #allocation2 [shape = 'f32[1,1]{1,0:T(1,128)S(1)}', space=vmem, size = 0x200, scoped, tag = 'scoped memory for tpu_custom_call.1']
  %s0 = inlined_call_operand.vmem [shape: f32[250,32], index: 0, kind: input, shape index: {}]
  %s1 = inlined_call_operand.vmem [shape: f32[128,32], index: 1, kind: input, shape index: {}]
  %s2 = inlined_call_operand.vmem [shape: f32[128,1], index: 2, kind: input, shape index: {}]
  %s3 = inlined_call_operand.vmem [shape: f32[64,128], index: 3, kind: input, shape index: {}]
  %s4 = inlined_call_operand.vmem [shape: f32[64,1], index: 4, kind: input, shape index: {}]
  %s5 = inlined_call_operand.vmem [shape: f32[1,64], index: 5, kind: input, shape index: {}]
  %s6 = inlined_call_operand.<no memory space> [shape: f32[1,1], index: 6, kind: input, shape index: {}]
  %s7 = inlined_call_operand.hbm [shape: f32[1,250], index: 7, kind: output, shape index: {}]
  %s8 = sld [smem:[#allocation0]]
  $region61: #{tpu_custom_call.1} parent=0
    _
  %s10 = ssub.s32 1, %s8
  %s11 = scalar_select 0, %s10, %s8
  %v12 = vstv %s6
  %13 = vst [vmem:[#allocation2] sm:$0x1] %v12
  $region1: #{tpu_custom_call.1} parent=0
    #allocation3 [shape = 'u8[1024]{0}', space=vmem, size = 0x400, scoped, tag = 'output window, operand 0']
    #allocation4 [shape = 's32[2]{0}', space=sflag, size = 0x8, scoped, tag = 'scoped memory for tpu_custom_call.1']
    %14 = vsyncpa [#allocation4], 0
    %s15 = scalar_lea.sflag [#allocation4], 1
    %16 = vsyncpa %s15, 0
    loop: start=0, step=1, limit=4
    $region2: #{tpu_custom_call.1} parent=1 // loop_pre_header
      _
    $region3: #{tpu_custom_call.1} parent=1 // loop_header
      %s18 = sphi 0, %s22
      %p19 = scmp.ge.s32.totalorder %s18, 4
      %s28 = sphi 0, %s30
      %s31 = sphi 0, %s28
      %s32 = sphi 0, %s31
      %s48 = sphi 0, %s32
      %s52 = sphi 0, %s52
      %s54 = sphi 0, %s52
      %s55 = sphi 0, %s54
      %s69 = sphi 0, %s55
      %s73 = sphi 0, %s73
      %s75 = sphi 0, %s73
      %s76 = sphi 0, %s75
      %s90 = sphi 0, %s76
      %s94 = sphi 0, %s94
      %s96 = sphi 0, %s94
      %s97 = sphi 0, %s96
      %s111 = sphi 0, %s97
      %s115 = sphi 0, %s115
      %s117 = sphi 0, %s115
      %s118 = sphi 0, %s117
      %s132 = sphi 0, %s118
      %s136 = sphi 0, %s136
      %s138 = sphi 0, %s136
      %s139 = sphi 0, %s138
      %s153 = sphi 0, %s139
      %s157 = sphi 0, %s157
      %s159 = sphi 0, %s157
      %s160 = sphi 0, %s159
      %s174 = sphi 0, %s160
      %s180 = sphi 0, %s182
      %s183 = sphi 0, %s180
      %s184 = sphi 0, %s183
      %s200 = sphi 0, %s184
    $region4: #{tpu_custom_call.1} parent=1 // loop_header_branch
      %21 = sbr.rel (%p19) target = $region8
    $region5: #{tpu_custom_call.1} parent=1 // loop_body
      %s23 = ssub.s32 %s18, 1
      %s24 = ssub.s32 %s18, 2
      %s25 = sadd.s32 %s18, 1
      %s26 = ssub.s32 %s18, %s25
      %p27 = scmp.eq.s32.totalorder %s26, 0
      %s29 = sadd.s32 %s28, 1
      %s30 = scalar_select %p27, %s28, %s29
      %p33 = pneg %p27
      %p34 = scmp.eq.s32.totalorder %s18, 1
      %p35 = por %p33, %p34
      %p36 = scmp.ne.s32.totalorder %s28, %s31
      %p37 = scmp.eq.s32.totalorder %s18, 0
      %p38 = por %p36, %p37
      %p39 = scmp.ne.s32.totalorder %s28, %s31
      %p40 = scmp.eq.s32.totalorder %s23, 1
      %p41 = por %p39, %p40
      %p42 = scmp.ne.s32.totalorder %s31, %s32
      %p43 = scmp.eq.s32.totalorder %s23, 0
      %p44 = por %p42, %p43
      %p45 = scmp.ne.s32.totalorder %s31, %s32
      %p46 = scmp.eq.s32.totalorder %s24, 1
      %p47 = por %p45, %p46
      %p49 = scmp.ne.s32.totalorder %s32, %s48
      %p50 = scmp.eq.s32.totalorder %s24, 0
      %p51 = por %p49, %p50
      %s53 = sadd.s32 %s52, 1
      %p56 = scmp.eq.s32.totalorder %s18, 1
      %p57 = scmp.ne.s32.totalorder %s52, %s54
      %p58 = scmp.eq.s32.totalorder %s18, 0
      %p59 = por %p57, %p58
      %p60 = scmp.ne.s32.totalorder %s52, %s54
      %p61 = scmp.eq.s32.totalorder %s23, 1
      %p62 = por %p60, %p61
      %p63 = scmp.ne.s32.totalorder %s54, %s55
      %p64 = scmp.eq.s32.totalorder %s23, 0
      %p65 = por %p63, %p64
      %p66 = scmp.ne.s32.totalorder %s54, %s55
      %p67 = scmp.eq.s32.totalorder %s24, 1
      %p68 = por %p66, %p67
      %p70 = scmp.ne.s32.totalorder %s55, %s69
      %p71 = scmp.eq.s32.totalorder %s24, 0
      %p72 = por %p70, %p71
      %s74 = sadd.s32 %s73, 1
      %p77 = scmp.eq.s32.totalorder %s18, 1
      %p78 = scmp.ne.s32.totalorder %s73, %s75
      %p79 = scmp.eq.s32.totalorder %s18, 0
      %p80 = por %p78, %p79
      %p81 = scmp.ne.s32.totalorder %s73, %s75
      %p82 = scmp.eq.s32.totalorder %s23, 1
      %p83 = por %p81, %p82
      %p84 = scmp.ne.s32.totalorder %s75, %s76
      %p85 = scmp.eq.s32.totalorder %s23, 0
      %p86 = por %p84, %p85
      %p87 = scmp.ne.s32.totalorder %s75, %s76
      %p88 = scmp.eq.s32.totalorder %s24, 1
      %p89 = por %p87, %p88
      %p91 = scmp.ne.s32.totalorder %s76, %s90
      %p92 = scmp.eq.s32.totalorder %s24, 0
      %p93 = por %p91, %p92
      %s95 = sadd.s32 %s94, 1
      %p98 = scmp.eq.s32.totalorder %s18, 1
      %p99 = scmp.ne.s32.totalorder %s94, %s96
      %p100 = scmp.eq.s32.totalorder %s18, 0
      %p101 = por %p99, %p100
      %p102 = scmp.ne.s32.totalorder %s94, %s96
      %p103 = scmp.eq.s32.totalorder %s23, 1
      %p104 = por %p102, %p103
      %p105 = scmp.ne.s32.totalorder %s96, %s97
      %p106 = scmp.eq.s32.totalorder %s23, 0
      %p107 = por %p105, %p106
      %p108 = scmp.ne.s32.totalorder %s96, %s97
      %p109 = scmp.eq.s32.totalorder %s24, 1
      %p110 = por %p108, %p109
      %p112 = scmp.ne.s32.totalorder %s97, %s111
      %p113 = scmp.eq.s32.totalorder %s24, 0
      %p114 = por %p112, %p113
      %s116 = sadd.s32 %s115, 1
      %p119 = scmp.eq.s32.totalorder %s18, 1
      %p120 = scmp.ne.s32.totalorder %s115, %s117
      %p121 = scmp.eq.s32.totalorder %s18, 0
      %p122 = por %p120, %p121
      %p123 = scmp.ne.s32.totalorder %s115, %s117
      %p124 = scmp.eq.s32.totalorder %s23, 1
      %p125 = por %p123, %p124
      %p126 = scmp.ne.s32.totalorder %s117, %s118
      %p127 = scmp.eq.s32.totalorder %s23, 0
      %p128 = por %p126, %p127
      %p129 = scmp.ne.s32.totalorder %s117, %s118
      %p130 = scmp.eq.s32.totalorder %s24, 1
      %p131 = por %p129, %p130
      %p133 = scmp.ne.s32.totalorder %s118, %s132
      %p134 = scmp.eq.s32.totalorder %s24, 0
      %p135 = por %p133, %p134
      %s137 = sadd.s32 %s136, 1
      %p140 = scmp.eq.s32.totalorder %s18, 1
      %p141 = scmp.ne.s32.totalorder %s136, %s138
      %p142 = scmp.eq.s32.totalorder %s18, 0
      %p143 = por %p141, %p142
      %p144 = scmp.ne.s32.totalorder %s136, %s138
      %p145 = scmp.eq.s32.totalorder %s23, 1
      %p146 = por %p144, %p145
      %p147 = scmp.ne.s32.totalorder %s138, %s139
      %p148 = scmp.eq.s32.totalorder %s23, 0
      %p149 = por %p147, %p148
      %p150 = scmp.ne.s32.totalorder %s138, %s139
      %p151 = scmp.eq.s32.totalorder %s24, 1
      %p152 = por %p150, %p151
      %p154 = scmp.ne.s32.totalorder %s139, %s153
      %p155 = scmp.eq.s32.totalorder %s24, 0
      %p156 = por %p154, %p155
      %s158 = sadd.s32 %s157, 1
      %p161 = scmp.eq.s32.totalorder %s18, 1
      %p162 = scmp.ne.s32.totalorder %s157, %s159
      %p163 = scmp.eq.s32.totalorder %s18, 0
      %p164 = por %p162, %p163
      %p165 = scmp.ne.s32.totalorder %s157, %s159
      %p166 = scmp.eq.s32.totalorder %s23, 1
      %p167 = por %p165, %p166
      %p168 = scmp.ne.s32.totalorder %s159, %s160
      %p169 = scmp.eq.s32.totalorder %s23, 0
      %p170 = por %p168, %p169
      %p171 = scmp.ne.s32.totalorder %s159, %s160
      %p172 = scmp.eq.s32.totalorder %s24, 1
      %p173 = por %p171, %p172
      %p175 = scmp.ne.s32.totalorder %s160, %s174
      %p176 = scmp.eq.s32.totalorder %s24, 0
      %p177 = por %p175, %p176
      %s178 = ssub.s32 %s18, %s25
      %p179 = scmp.eq.s32.totalorder %s178, 0
      %s181 = sadd.s32 %s180, 1
      %s182 = scalar_select %p179, %s180, %s181
      %p185 = pneg %p179
      %p186 = scmp.eq.s32.totalorder %s18, 1
      %p187 = por %p185, %p186
      %p188 = scmp.ne.s32.totalorder %s180, %s183
      %p189 = scmp.eq.s32.totalorder %s18, 0
      %p190 = por %p188, %p189
      %p191 = scmp.ne.s32.totalorder %s180, %s183
      %p192 = scmp.eq.s32.totalorder %s23, 1
      %p193 = por %p191, %p192
      %p194 = scmp.ne.s32.totalorder %s183, %s184
      %p195 = scmp.eq.s32.totalorder %s23, 0
      %p196 = por %p194, %p195
      %p197 = scmp.ne.s32.totalorder %s183, %s184
      %p198 = scmp.eq.s32.totalorder %s24, 1
      %p199 = por %p197, %p198
      %p201 = scmp.ne.s32.totalorder %s184, %s200
      %p202 = scmp.eq.s32.totalorder %s24, 0
      %p203 = por %p201, %p202
      %p204 = scmp.le.s32.totalorder 1, %s18
      %p205 = scmp.lt.s32.totalorder %s18, 3
      %p206 = pnand %p204, %p205
      %p207 = pneg %p206
      // Predicated region
      $region9: #{tpu_custom_call.1} parent=5 // pred_check
        _
      $region10: #{tpu_custom_call.1} parent=5 // pred_check_branch
        %209 = sbr.rel (%p206) target = $region12
      $region11: #{tpu_custom_call.1} parent=5 // pred_region
        %s210 = ssub.s32 %s18, 1
        // Predicated region
        $region13: #{tpu_custom_call.1} parent=11 // pred_check
          %p211 = pneg %p65
        $region14: #{tpu_custom_call.1} parent=11 // pred_check_branch
          %213 = sbr.rel (%p211) target = $region16
        $region15: #{tpu_custom_call.1} parent=11 // pred_region
          _
        $region16: #{tpu_custom_call.1} parent=11 // pred_fallthru
          _
        // Predicated region
        $region17: #{tpu_custom_call.1} parent=11 // pred_check
          %p214 = pneg %p86
        $region18: #{tpu_custom_call.1} parent=11 // pred_check_branch
          %216 = sbr.rel (%p214) target = $region20
        $region19: #{tpu_custom_call.1} parent=11 // pred_region
          _
        $region20: #{tpu_custom_call.1} parent=11 // pred_fallthru
          _
        // Predicated region
        $region21: #{tpu_custom_call.1} parent=11 // pred_check
          %p217 = pneg %p107
        $region22: #{tpu_custom_call.1} parent=11 // pred_check_branch
          %219 = sbr.rel (%p217) target = $region24
        $region23: #{tpu_custom_call.1} parent=11 // pred_region
          _
        $region24: #{tpu_custom_call.1} parent=11 // pred_fallthru
          _
        // Predicated region
        $region25: #{tpu_custom_call.1} parent=11 // pred_check
          %p220 = pneg %p128
        $region26: #{tpu_custom_call.1} parent=11 // pred_check_branch
          %222 = sbr.rel (%p220) target = $region28
        $region27: #{tpu_custom_call.1} parent=11 // pred_region
          _
        $region28: #{tpu_custom_call.1} parent=11 // pred_fallthru
          _
        // Predicated region
        $region29: #{tpu_custom_call.1} parent=11 // pred_check
          %p223 = pneg %p149
        $region30: #{tpu_custom_call.1} parent=11 // pred_check_branch
          %225 = sbr.rel (%p223) target = $region32
        $region31: #{tpu_custom_call.1} parent=11 // pred_region
          _
        $region32: #{tpu_custom_call.1} parent=11 // pred_fallthru
          _
        // Predicated region
        $region33: #{tpu_custom_call.1} parent=11 // pred_check
          %p226 = pneg %p170
        $region34: #{tpu_custom_call.1} parent=11 // pred_check_branch
          %228 = sbr.rel (%p226) target = $region36
        $region35: #{tpu_custom_call.1} parent=11 // pred_region
          _
        $region36: #{tpu_custom_call.1} parent=11 // pred_fallthru
          _
      $region12: #{tpu_custom_call.1} parent=5 // pred_fallthru
        _
      %p229 = scmp.lt.s32.totalorder %s18, 2
      // Predicated region
      $region37: #{tpu_custom_call.1} parent=5 // pred_check
        %p230 = pneg %p229
      $region38: #{tpu_custom_call.1} parent=5 // pred_check_branch
        %232 = sbr.rel (%p230) target = $region40
      $region39: #{tpu_custom_call.1} parent=5 // pred_region
        // Predicated region
        $region41: #{tpu_custom_call.1} parent=39 // pred_check
          %p233 = pneg %p38
        $region42: #{tpu_custom_call.1} parent=39 // pred_check_branch
          %235 = sbr.rel (%p233) target = $region44
        $region43: #{tpu_custom_call.1} parent=39 // pred_region
          %s236 = smul.u32 16, %s18
          %p237 = scmp.lt.s32.totalorder %s236, 31
          %s238 = scalar_select %p237, %s236, 31
          %s239 = smul.addr %s238, 8
          %s240 = scalar_lea.vmem %s0, %s239
          %s241 = smul.u32 16, %s18
        $region44: #{tpu_custom_call.1} parent=39 // pred_fallthru
          _
      $region40: #{tpu_custom_call.1} parent=5 // pred_fallthru
        _
      %p242 = scmp.le.s32.totalorder 1, %s18
      %p243 = scmp.lt.s32.totalorder %s18, 3
      %p244 = pnand %p242, %p243
      %p245 = pneg %p244
      // Predicated region
      $region45: #{tpu_custom_call.1} parent=5 // pred_check
        _
      $region46: #{tpu_custom_call.1} parent=5 // pred_check_branch
        %247 = sbr.rel (%p244) target = $region48
      $region47: #{tpu_custom_call.1} parent=5 // pred_region
        %s248 = ssub.s32 %s18, 1
        %s249 = smul.u32 16, %s23
        %p250 = scmp.lt.s32.totalorder %s249, 31
        %s251 = scalar_select %p250, %s249, 31
        %s252 = smul.addr %s251, 8
        %s253 = scalar_lea.vmem %s0, %s252
        %p254 = pneg %p44
        %p255 = pneg %p41
        %p256 = pneg %p65
        %p257 = pneg %p62
        %p258 = pneg %p86
        %p259 = pneg %p83
        %p260 = pneg %p107
        %p261 = pneg %p104
        %p262 = pneg %p128
        %p263 = pneg %p125
        %p264 = pneg %p149
        %p265 = pneg %p146
        %p266 = pneg %p170
        %p267 = pneg %p167
        %p268 = pneg %p196
        %p269 = pneg %p193
        %s270 = sand.u32 %s183, 1
        %s271 = scalar_lea.sflag [#allocation4], %s270
        %s272 = sand.u32 %s183, 1
        %s273 = scalar_lea.vmem [#allocation3], %s272
        %s274 = smul.u32 16, %s23
        %p275 = scmp.lt.s32.totalorder %s274, 31
        %s276 = scalar_select %p275, %s274, 31
        %s277 = smul.addr %s276, 8
        %s278 = scalar_lea.vmem %s0, %s277
        %s279 = smul.u32 16, %s23
        %v280 = vld [vmem:[%s278] sm:$0xff]
        %v281 = vld [vmem:[%s278 + $0x8] sm:$0xff]
        %v282 = vld [vmem:[%s278 + $0x10] sm:$0xff]
        %v283 = vld [vmem:[%s278 + $0x18] sm:$0xff]
        %v284 = vld [vmem:[%s278 + $0x20] sm:$0xff]
        %v285 = vld [vmem:[%s278 + $0x28] sm:$0xff]
        %v286 = vld [vmem:[%s278 + $0x30] sm:$0xff]
        %v287 = vld [vmem:[%s278 + $0x38] sm:$0xff]
        %v288 = vld [vmem:[%s278 + $0x40] sm:$0xff]
        %v289 = vld [vmem:[%s278 + $0x48] sm:$0xff]
        %v290 = vld [vmem:[%s278 + $0x50] sm:$0xff]
        %v291 = vld [vmem:[%s278 + $0x58] sm:$0xff]
        %v292 = vld [vmem:[%s278 + $0x60] sm:$0xff]
        %v293 = vld [vmem:[%s278 + $0x68] sm:$0xff]
        %v294 = vld [vmem:[%s278 + $0x70] sm:$0xff]
        %v295 = vld [vmem:[%s278 + $0x78] sm:$0xff]
        %v296 = vld [vmem:[%s1] sm:$0xff]
        %v297 = vld [vmem:[%s1 + $0x8] sm:$0xff]
        %v298 = vld [vmem:[%s1 + $0x10] sm:$0xff]
        %v299 = vld [vmem:[%s1 + $0x18] sm:$0xff]
        %v300 = vld [vmem:[%s1 + $0x20] sm:$0xff]
        %v301 = vld [vmem:[%s1 + $0x28] sm:$0xff]
        %v302 = vld [vmem:[%s1 + $0x30] sm:$0xff]
        %v303 = vld [vmem:[%s1 + $0x38] sm:$0xff]
        %v304 = vld [vmem:[%s1 + $0x40] sm:$0xff]
        %v305 = vld [vmem:[%s1 + $0x48] sm:$0xff]
        %v306 = vld [vmem:[%s1 + $0x50] sm:$0xff]
        %v307 = vld [vmem:[%s1 + $0x58] sm:$0xff]
        %v308 = vld [vmem:[%s1 + $0x60] sm:$0xff]
        %v309 = vld [vmem:[%s1 + $0x68] sm:$0xff]
        %v310 = vld [vmem:[%s1 + $0x70] sm:$0xff]
        %v311 = vld [vmem:[%s1 + $0x78] sm:$0xff]
        %v312 = vld [vmem:[%s2] sm:$0xff]
        %v313 = vld [vmem:[%s2 + $0x8] sm:$0xff]
        %v314 = vld [vmem:[%s2 + $0x10] sm:$0xff]
        %v315 = vld [vmem:[%s2 + $0x18] sm:$0xff]
        %v316 = vld [vmem:[%s2 + $0x20] sm:$0xff]
        %v317 = vld [vmem:[%s2 + $0x28] sm:$0xff]
        %v318 = vld [vmem:[%s2 + $0x30] sm:$0xff]
        %v319 = vld [vmem:[%s2 + $0x38] sm:$0xff]
        %v320 = vld [vmem:[%s2 + $0x40] sm:$0xff]
        %v321 = vld [vmem:[%s2 + $0x48] sm:$0xff]
        %v322 = vld [vmem:[%s2 + $0x50] sm:$0xff]
        %v323 = vld [vmem:[%s2 + $0x58] sm:$0xff]
        %v324 = vld [vmem:[%s2 + $0x60] sm:$0xff]
        %v325 = vld [vmem:[%s2 + $0x68] sm:$0xff]
        %v326 = vld [vmem:[%s2 + $0x70] sm:$0xff]
        %v327 = vld [vmem:[%s2 + $0x78] sm:$0xff]
        %329 = vset.pattern.permute.xlu0 0
        %330 = vperm.xlu0 %329, %v312
        %v331 = vpop.permute.xlu0 %330
        %334 = vset.pattern.permute.xlu0 0
        %335 = vperm.xlu0 %334, %v313
        %v336 = vpop.permute.xlu0 %335
        %339 = vset.pattern.permute.xlu0 0
        %340 = vperm.xlu0 %339, %v314
        %v341 = vpop.permute.xlu0 %340
        %344 = vset.pattern.permute.xlu0 0
        %345 = vperm.xlu0 %344, %v315
        %v346 = vpop.permute.xlu0 %345
        %349 = vset.pattern.permute.xlu0 0
        %350 = vperm.xlu0 %349, %v316
        %v351 = vpop.permute.xlu0 %350
        %354 = vset.pattern.permute.xlu0 0
        %355 = vperm.xlu0 %354, %v317
        %v356 = vpop.permute.xlu0 %355
        %359 = vset.pattern.permute.xlu0 0
        %360 = vperm.xlu0 %359, %v318
        %v361 = vpop.permute.xlu0 %360
        %364 = vset.pattern.permute.xlu0 0
        %365 = vperm.xlu0 %364, %v319
        %v366 = vpop.permute.xlu0 %365
        %369 = vset.pattern.permute.xlu0 0
        %370 = vperm.xlu0 %369, %v320
        %v371 = vpop.permute.xlu0 %370
        %374 = vset.pattern.permute.xlu0 0
        %375 = vperm.xlu0 %374, %v321
        %v376 = vpop.permute.xlu0 %375
        %379 = vset.pattern.permute.xlu0 0
        %380 = vperm.xlu0 %379, %v322
        %v381 = vpop.permute.xlu0 %380
        %384 = vset.pattern.permute.xlu0 0
        %385 = vperm.xlu0 %384, %v323
        %v386 = vpop.permute.xlu0 %385
        %389 = vset.pattern.permute.xlu0 0
        %390 = vperm.xlu0 %389, %v324
        %v391 = vpop.permute.xlu0 %390
        %394 = vset.pattern.permute.xlu0 0
        %395 = vperm.xlu0 %394, %v325
        %v396 = vpop.permute.xlu0 %395
        %399 = vset.pattern.permute.xlu0 0
        %400 = vperm.xlu0 %399, %v326
        %v401 = vpop.permute.xlu0 %400
        %404 = vset.pattern.permute.xlu0 0
        %405 = vperm.xlu0 %404, %v327
        %v406 = vpop.permute.xlu0 %405
        %vm408 = vcmask 261120
        %v410 = vsel %vm408, %v296, 0
        %v413 = vsel %vm408, %v297, 0
        %v416 = vsel %vm408, %v298, 0
        %v419 = vsel %vm408, %v299, 0
        %v422 = vsel %vm408, %v300, 0
        %v425 = vsel %vm408, %v301, 0
        %v428 = vsel %vm408, %v302, 0
        %v431 = vsel %vm408, %v303, 0
        %v434 = vsel %vm408, %v304, 0
        %v437 = vsel %vm408, %v305, 0
        %v440 = vsel %vm408, %v306, 0
        %v443 = vsel %vm408, %v307, 0
        %v446 = vsel %vm408, %v308, 0
        %v449 = vsel %vm408, %v309, 0
        %v452 = vsel %vm408, %v310, 0
        %v455 = vsel %vm408, %v311, 0
        %v458 = vsel %vm408, %v280, 0
        %v461 = vsel %vm408, %v281, 0
        %v464 = vsel %vm408, %v282, 0
        %v467 = vsel %vm408, %v283, 0
        %v470 = vsel %vm408, %v284, 0
        %v473 = vsel %vm408, %v285, 0
        %v476 = vsel %vm408, %v286, 0
        %v479 = vsel %vm408, %v287, 0
        %v482 = vsel %vm408, %v288, 0
        %v485 = vsel %vm408, %v289, 0
        %v488 = vsel %vm408, %v290, 0
        %v491 = vsel %vm408, %v291, 0
        %v494 = vsel %vm408, %v292, 0
        %v497 = vsel %vm408, %v293, 0
        %v500 = vsel %vm408, %v294, 0
        %v503 = vsel %vm408, %v295, 0
        %505 = vmatprep.subr.mxu0 0.0
        %506 = vmatpush1.xpose.msra.mxu0 %v503
        %507 = vmatprep.subr.mxu0 0.0
        %508 = vmatpush1.xpose.msra.mxu0 %v500
        %509 = vmatprep.subr.mxu0 0.0
        %510 = vmatpush1.xpose.msra.mxu0 %v497
        %511 = vmatprep.subr.mxu0 0.0
        %512 = vmatpush1.xpose.msra.mxu0 %v494
        %513 = vmatprep.subr.mxu0 0.0
        %514 = vmatpush1.xpose.msra.mxu0 %v491
        %515 = vmatprep.subr.mxu0 0.0
        %516 = vmatpush1.xpose.msra.mxu0 %v488
        %517 = vmatprep.subr.mxu0 0.0
        %518 = vmatpush1.xpose.msra.mxu0 %v485
        %519 = vmatprep.subr.mxu0 0.0
        %520 = vmatpush1.xpose.msra.mxu0 %v482
        %521 = vmatprep.subr.mxu0 0.0
        %522 = vmatpush1.xpose.msra.mxu0 %v479
        %523 = vmatprep.subr.mxu0 0.0
        %524 = vmatpush1.xpose.msra.mxu0 %v476
        %525 = vmatprep.subr.mxu0 0.0
        %526 = vmatpush1.xpose.msra.mxu0 %v473
        %527 = vmatprep.subr.mxu0 0.0
        %528 = vmatpush1.xpose.msra.mxu0 %v470
        %529 = vmatprep.subr.mxu0 0.0
        %530 = vmatpush1.xpose.msra.mxu0 %v467
        %531 = vmatprep.subr.mxu0 0.0
        %532 = vmatpush1.xpose.msra.mxu0 %v464
        %533 = vmatprep.subr.mxu0 0.0
        %534 = vmatpush1.xpose.msra.mxu0 %v461
        %535 = vmatprep.subr.mxu0 0.0
        %536 = vmatpush1.xpose.msra.mxu0 %v458
        %537 = vmatprep.subr.mxu0 0.0
        %538 = vmatpush2.xpose.msra.mxu0 0.0
        %539 = vmatprep.subr.mxu0 0.0
        %540 = vmatpush2.xpose.msra.mxu0 0.0
        %541 = vmatprep.subr.mxu0 0.0
        %542 = vmatpush2.xpose.msra.mxu0 0.0
        %543 = vmatprep.subr.mxu0 0.0
        %544 = vmatpush2.xpose.msra.mxu0 0.0
        %545 = vmatprep.subr.mxu0 0.0
        %546 = vmatpush2.xpose.msra.mxu0 0.0
        %547 = vmatprep.subr.mxu0 0.0
        %548 = vmatpush2.xpose.msra.mxu0 0.0
        %549 = vmatprep.subr.mxu0 0.0
        %550 = vmatpush2.xpose.msra.mxu0 0.0
        %551 = vmatprep.subr.mxu0 0.0
        %552 = vmatpush2.xpose.msra.mxu0 0.0
        %553 = vmatprep.subr.mxu0 0.0
        %554 = vmatpush2.xpose.msra.mxu0 0.0
        %555 = vmatprep.subr.mxu0 0.0
        %556 = vmatpush2.xpose.msra.mxu0 0.0
        %557 = vmatprep.subr.mxu0 0.0
        %558 = vmatpush2.xpose.msra.mxu0 0.0
        %559 = vmatprep.subr.mxu0 0.0
        %560 = vmatpush2.xpose.msra.mxu0 0.0
        %561 = vmatprep.subr.mxu0 0.0
        %562 = vmatpush2.xpose.msra.mxu0 0.0
        %563 = vmatprep.subr.mxu0 0.0
        %564 = vmatpush2.xpose.msra.mxu0 0.0
        %565 = vmatprep.subr.mxu0 0.0
        %566 = vmatpush2.xpose.msra.mxu0 0.0
        %567 = vmatprep.subr.mxu0 0.0
        %568 = vmatpush2.xpose.msra.mxu0 0.0
        %569 = vmatprep.mubr.f32.mxu0 0.0
        %570 = vmatmul.mubr.f32.gmra.mxu0 %v410
        %v571 = vpop.f32.mrf.mxu0
        %v572 = vadd.f32 %v331, %v571
        %v573 = vpop.f32.mrf.mxu0
        %574 = vmatprep.mubr.f32.mxu0 0.0
        %575 = vmatmul.mubr.f32.gmra.mxu0 %v413
        %v576 = vpop.f32.mrf.mxu0
        %v577 = vadd.f32 %v336, %v576
        %v578 = vpop.f32.mrf.mxu0
        %579 = vmatprep.mubr.f32.mxu0 0.0
        %580 = vmatmul.mubr.f32.gmra.mxu0 %v416
        %v581 = vpop.f32.mrf.mxu0
        %v582 = vadd.f32 %v341, %v581
        %v583 = vpop.f32.mrf.mxu0
        %584 = vmatprep.mubr.f32.mxu0 0.0
        %585 = vmatmul.mubr.f32.gmra.mxu0 %v419
        %v586 = vpop.f32.mrf.mxu0
        %v587 = vadd.f32 %v346, %v586
        %v588 = vpop.f32.mrf.mxu0
        %589 = vmatprep.mubr.f32.mxu0 0.0
        %590 = vmatmul.mubr.f32.gmra.mxu0 %v422
        %v591 = vpop.f32.mrf.mxu0
        %v592 = vadd.f32 %v351, %v591
        %v593 = vpop.f32.mrf.mxu0
        %594 = vmatprep.mubr.f32.mxu0 0.0
        %595 = vmatmul.mubr.f32.gmra.mxu0 %v425
        %v596 = vpop.f32.mrf.mxu0
        %v597 = vadd.f32 %v356, %v596
        %v598 = vpop.f32.mrf.mxu0
        %599 = vmatprep.mubr.f32.mxu0 0.0
        %600 = vmatmul.mubr.f32.gmra.mxu0 %v428
        %v601 = vpop.f32.mrf.mxu0
        %v602 = vadd.f32 %v361, %v601
        %v603 = vpop.f32.mrf.mxu0
        %604 = vmatprep.mubr.f32.mxu0 0.0
        %605 = vmatmul.mubr.f32.gmra.mxu0 %v431
        %v606 = vpop.f32.mrf.mxu0
        %v607 = vadd.f32 %v366, %v606
        %v608 = vpop.f32.mrf.mxu0
        %609 = vmatprep.mubr.f32.mxu0 0.0
        %610 = vmatmul.mubr.f32.gmra.mxu0 %v434
        %v611 = vpop.f32.mrf.mxu0
        %v612 = vadd.f32 %v371, %v611
        %v613 = vpop.f32.mrf.mxu0
        %614 = vmatprep.mubr.f32.mxu0 0.0
        %615 = vmatmul.mubr.f32.gmra.mxu0 %v437
        %v616 = vpop.f32.mrf.mxu0
        %v617 = vadd.f32 %v376, %v616
        %v618 = vpop.f32.mrf.mxu0
        %619 = vmatprep.mubr.f32.mxu0 0.0
        %620 = vmatmul.mubr.f32.gmra.mxu0 %v440
        %v621 = vpop.f32.mrf.mxu0
        %v622 = vadd.f32 %v381, %v621
        %v623 = vpop.f32.mrf.mxu0
        %624 = vmatprep.mubr.f32.mxu0 0.0
        %625 = vmatmul.mubr.f32.gmra.mxu0 %v443
        %v626 = vpop.f32.mrf.mxu0
        %v627 = vadd.f32 %v386, %v626
        %v628 = vpop.f32.mrf.mxu0
        %629 = vmatprep.mubr.f32.mxu0 0.0
        %630 = vmatmul.mubr.f32.gmra.mxu0 %v446
        %v631 = vpop.f32.mrf.mxu0
        %v632 = vadd.f32 %v391, %v631
        %v633 = vpop.f32.mrf.mxu0
        %634 = vmatprep.mubr.f32.mxu0 0.0
        %635 = vmatmul.mubr.f32.gmra.mxu0 %v449
        %v636 = vpop.f32.mrf.mxu0
        %v637 = vadd.f32 %v396, %v636
        %v638 = vpop.f32.mrf.mxu0
        %639 = vmatprep.mubr.f32.mxu0 0.0
        %640 = vmatmul.mubr.f32.gmra.mxu0 %v452
        %v641 = vpop.f32.mrf.mxu0
        %v642 = vadd.f32 %v401, %v641
        %v643 = vpop.f32.mrf.mxu0
        %644 = vmatprep.mubr.f32.mxu0 0.0
        %645 = vmatmul.mubr.f32.gmra.mxu0 %v455
        %v646 = vpop.f32.mrf.mxu0
        %v647 = vadd.f32 %v406, %v646
        %v648 = vpop.f32.mrf.mxu0
        %649 = vdwg.mxu0
        %v650 = vmin.f32 %v572, 0.0
        %v651 = vmin.f32 %v577, 0.0
        %v652 = vmin.f32 %v582, 0.0
        %v653 = vmin.f32 %v587, 0.0
        %v654 = vmin.f32 %v592, 0.0
        %v655 = vmin.f32 %v597, 0.0
        %v656 = vmin.f32 %v602, 0.0
        %v657 = vmin.f32 %v607, 0.0
        %v658 = vmin.f32 %v612, 0.0
        %v659 = vmin.f32 %v617, 0.0
        %v660 = vmin.f32 %v622, 0.0
        %v661 = vmin.f32 %v627, 0.0
        %v662 = vmin.f32 %v632, 0.0
        %v663 = vmin.f32 %v637, 0.0
        %v664 = vmin.f32 %v642, 0.0
        %v665 = vmin.f32 %v647, 0.0
        %v666 = vmul.f32 %v650, 10.0
        %v667 = vmul.f32 %v651, 10.0
        %v668 = vmul.f32 %v652, 10.0
        %v669 = vmul.f32 %v653, 10.0
        %v670 = vmul.f32 %v654, 10.0
        %v671 = vmul.f32 %v655, 10.0
        %v672 = vmul.f32 %v656, 10.0
        %v673 = vmul.f32 %v657, 10.0
        %v674 = vmul.f32 %v658, 10.0
        %v675 = vmul.f32 %v659, 10.0
        %v676 = vmul.f32 %v660, 10.0
        %v677 = vmul.f32 %v661, 10.0
        %v678 = vmul.f32 %v662, 10.0
        %v679 = vmul.f32 %v663, 10.0
        %v680 = vmul.f32 %v664, 10.0
        %v681 = vmul.f32 %v665, 10.0
        %v682 = vmul.f32 %v666, 1.442695
        %v683 = vpow.pop %v682
        %v684 = vmul.f32 %v667, 1.442695
        %v685 = vpow.pop %v684
        %v686 = vmul.f32 %v668, 1.442695
        %v687 = vpow.pop %v686
        %v688 = vmul.f32 %v669, 1.442695
        %v689 = vpow.pop %v688
        %v690 = vmul.f32 %v670, 1.442695
        %v691 = vpow.pop %v690
        %v692 = vmul.f32 %v671, 1.442695
        %v693 = vpow.pop %v692
        %v694 = vmul.f32 %v672, 1.442695
        %v695 = vpow.pop %v694
        %v696 = vmul.f32 %v673, 1.442695
        %v697 = vpow.pop %v696
        %v698 = vmul.f32 %v674, 1.442695
        %v699 = vpow.pop %v698
        %v700 = vmul.f32 %v675, 1.442695
        %v701 = vpow.pop %v700
        %v702 = vmul.f32 %v676, 1.442695
        %v703 = vpow.pop %v702
        %v704 = vmul.f32 %v677, 1.442695
        %v705 = vpow.pop %v704
        %v706 = vmul.f32 %v678, 1.442695
        %v707 = vpow.pop %v706
        %v708 = vmul.f32 %v679, 1.442695
        %v709 = vpow.pop %v708
        %v710 = vmul.f32 %v680, 1.442695
        %v711 = vpow.pop %v710
        %v712 = vmul.f32 %v681, 1.442695
        %v713 = vpow.pop %v712
        %v714 = vsub.f32 %v683, 1.0
        %v715 = vsub.f32 %v685, 1.0
        %v716 = vsub.f32 %v687, 1.0
        %v717 = vsub.f32 %v689, 1.0
        %v718 = vsub.f32 %v691, 1.0
        %v719 = vsub.f32 %v693, 1.0
        %v720 = vsub.f32 %v695, 1.0
        %v721 = vsub.f32 %v697, 1.0
        %v722 = vsub.f32 %v699, 1.0
        %v723 = vsub.f32 %v701, 1.0
        %v724 = vsub.f32 %v703, 1.0
        %v725 = vsub.f32 %v705, 1.0
        %v726 = vsub.f32 %v707, 1.0
        %v727 = vsub.f32 %v709, 1.0
        %v728 = vsub.f32 %v711, 1.0
        %v729 = vsub.f32 %v713, 1.0
        %v730 = vmul.f32 %v666, 0.16666667
        %v731 = vmul.f32 %v667, 0.16666667
        %v732 = vmul.f32 %v668, 0.16666667
        %v733 = vmul.f32 %v669, 0.16666667
        %v734 = vmul.f32 %v670, 0.16666667
        %v735 = vmul.f32 %v671, 0.16666667
        %v736 = vmul.f32 %v672, 0.16666667
        %v737 = vmul.f32 %v673, 0.16666667
        %v738 = vmul.f32 %v674, 0.16666667
        %v739 = vmul.f32 %v675, 0.16666667
        %v740 = vmul.f32 %v676, 0.16666667
        %v741 = vmul.f32 %v677, 0.16666667
        %v742 = vmul.f32 %v678, 0.16666667
        %v743 = vmul.f32 %v679, 0.16666667
        %v744 = vmul.f32 %v680, 0.16666667
        %v745 = vmul.f32 %v681, 0.16666667
        %v746 = vadd.f32 %v730, 0.5
        %v747 = vadd.f32 %v731, 0.5
        %v748 = vadd.f32 %v732, 0.5
        %v749 = vadd.f32 %v733, 0.5
        %v750 = vadd.f32 %v734, 0.5
        %v751 = vadd.f32 %v735, 0.5
        %v752 = vadd.f32 %v736, 0.5
        %v753 = vadd.f32 %v737, 0.5
        %v754 = vadd.f32 %v738, 0.5
        %v755 = vadd.f32 %v739, 0.5
        %v756 = vadd.f32 %v740, 0.5
        %v757 = vadd.f32 %v741, 0.5
        %v758 = vadd.f32 %v742, 0.5
        %v759 = vadd.f32 %v743, 0.5
        %v760 = vadd.f32 %v744, 0.5
        %v761 = vadd.f32 %v745, 0.5
        %v762 = vmul.f32 %v666, %v746
        %v763 = vmul.f32 %v667, %v747
        %v764 = vmul.f32 %v668, %v748
        %v765 = vmul.f32 %v669, %v749
        %v766 = vmul.f32 %v670, %v750
        %v767 = vmul.f32 %v671, %v751
        %v768 = vmul.f32 %v672, %v752
        %v769 = vmul.f32 %v673, %v753
        %v770 = vmul.f32 %v674, %v754
        %v771 = vmul.f32 %v675, %v755
        %v772 = vmul.f32 %v676, %v756
        %v773 = vmul.f32 %v677, %v757
        %v774 = vmul.f32 %v678, %v758
        %v775 = vmul.f32 %v679, %v759
        %v776 = vmul.f32 %v680, %v760
        %v777 = vmul.f32 %v681, %v761
        %v778 = vadd.f32 %v762, 1.0
        %v779 = vadd.f32 %v763, 1.0
        %v780 = vadd.f32 %v764, 1.0
        %v781 = vadd.f32 %v765, 1.0
        %v782 = vadd.f32 %v766, 1.0
        %v783 = vadd.f32 %v767, 1.0
        %v784 = vadd.f32 %v768, 1.0
        %v785 = vadd.f32 %v769, 1.0
        %v786 = vadd.f32 %v770, 1.0
        %v787 = vadd.f32 %v771, 1.0
        %v788 = vadd.f32 %v772, 1.0
        %v789 = vadd.f32 %v773, 1.0
        %v790 = vadd.f32 %v774, 1.0
        %v791 = vadd.f32 %v775, 1.0
        %v792 = vadd.f32 %v776, 1.0
        %v793 = vadd.f32 %v777, 1.0
        %v794 = vmul.f32 %v666, %v778
        %v795 = vmul.f32 %v667, %v779
        %v796 = vmul.f32 %v668, %v780
        %v797 = vmul.f32 %v669, %v781
        %v798 = vmul.f32 %v670, %v782
        %v799 = vmul.f32 %v671, %v783
        %v800 = vmul.f32 %v672, %v784
        %v801 = vmul.f32 %v673, %v785
        %v802 = vmul.f32 %v674, %v786
        %v803 = vmul.f32 %v675, %v787
        %v804 = vmul.f32 %v676, %v788
        %v805 = vmul.f32 %v677, %v789
        %v806 = vmul.f32 %v678, %v790
        %v807 = vmul.f32 %v679, %v791
        %v808 = vmul.f32 %v680, %v792
        %v809 = vmul.f32 %v681, %v793
        %vm810 = vcmp.gt.f32.partialorder %v666, -0.04
        %vm811 = vcmp.gt.f32.partialorder %v667, -0.04
        %vm812 = vcmp.gt.f32.partialorder %v668, -0.04
        %vm813 = vcmp.gt.f32.partialorder %v669, -0.04
        %vm814 = vcmp.gt.f32.partialorder %v670, -0.04
        %vm815 = vcmp.gt.f32.partialorder %v671, -0.04
        %vm816 = vcmp.gt.f32.partialorder %v672, -0.04
        %vm817 = vcmp.gt.f32.partialorder %v673, -0.04
        %vm818 = vcmp.gt.f32.partialorder %v674, -0.04
        %vm819 = vcmp.gt.f32.partialorder %v675, -0.04
        %vm820 = vcmp.gt.f32.partialorder %v676, -0.04
        %vm821 = vcmp.gt.f32.partialorder %v677, -0.04
        %vm822 = vcmp.gt.f32.partialorder %v678, -0.04
        %vm823 = vcmp.gt.f32.partialorder %v679, -0.04
        %vm824 = vcmp.gt.f32.partialorder %v680, -0.04
        %vm825 = vcmp.gt.f32.partialorder %v681, -0.04
        %v826 = vsel %vm810, %v794, %v714
        %v827 = vsel %vm811, %v795, %v715
        %v828 = vsel %vm812, %v796, %v716
        %v829 = vsel %vm813, %v797, %v717
        %v830 = vsel %vm814, %v798, %v718
        %v831 = vsel %vm815, %v799, %v719
        %v832 = vsel %vm816, %v800, %v720
        %v833 = vsel %vm817, %v801, %v721
        %v834 = vsel %vm818, %v802, %v722
        %v835 = vsel %vm819, %v803, %v723
        %v836 = vsel %vm820, %v804, %v724
        %v837 = vsel %vm821, %v805, %v725
        %v838 = vsel %vm822, %v806, %v726
        %v839 = vsel %vm823, %v807, %v727
        %v840 = vsel %vm824, %v808, %v728
        %v841 = vsel %vm825, %v809, %v729
        %vm842 = vcmp.gt.f32.partialorder %v572, 0.0
        %vm843 = vcmp.gt.f32.partialorder %v577, 0.0
        %vm844 = vcmp.gt.f32.partialorder %v582, 0.0
        %vm845 = vcmp.gt.f32.partialorder %v587, 0.0
        %vm846 = vcmp.gt.f32.partialorder %v592, 0.0
        %vm847 = vcmp.gt.f32.partialorder %v597, 0.0
        %vm848 = vcmp.gt.f32.partialorder %v602, 0.0
        %vm849 = vcmp.gt.f32.partialorder %v607, 0.0
        %vm850 = vcmp.gt.f32.partialorder %v612, 0.0
        %vm851 = vcmp.gt.f32.partialorder %v617, 0.0
        %vm852 = vcmp.gt.f32.partialorder %v622, 0.0
        %vm853 = vcmp.gt.f32.partialorder %v627, 0.0
        %vm854 = vcmp.gt.f32.partialorder %v632, 0.0
        %vm855 = vcmp.gt.f32.partialorder %v637, 0.0
        %vm856 = vcmp.gt.f32.partialorder %v642, 0.0
        %vm857 = vcmp.gt.f32.partialorder %v647, 0.0
        %v858 = vmul.f32 %v826, 0.1
        %v859 = vmul.f32 %v827, 0.1
        %v860 = vmul.f32 %v828, 0.1
        %v861 = vmul.f32 %v829, 0.1
        %v862 = vmul.f32 %v830, 0.1
        %v863 = vmul.f32 %v831, 0.1
        %v864 = vmul.f32 %v832, 0.1
        %v865 = vmul.f32 %v833, 0.1
        %v866 = vmul.f32 %v834, 0.1
        %v867 = vmul.f32 %v835, 0.1
        %v868 = vmul.f32 %v836, 0.1
        %v869 = vmul.f32 %v837, 0.1
        %v870 = vmul.f32 %v838, 0.1
        %v871 = vmul.f32 %v839, 0.1
        %v872 = vmul.f32 %v840, 0.1
        %v873 = vmul.f32 %v841, 0.1
        %v874 = vsel %vm842, %v572, %v858
        %v875 = vsel %vm843, %v577, %v859
        %v876 = vsel %vm844, %v582, %v860
        %v877 = vsel %vm845, %v587, %v861
        %v878 = vsel %vm846, %v592, %v862
        %v879 = vsel %vm847, %v597, %v863
        %v880 = vsel %vm848, %v602, %v864
        %v881 = vsel %vm849, %v607, %v865
        %v882 = vsel %vm850, %v612, %v866
        %v883 = vsel %vm851, %v617, %v867
        %v884 = vsel %vm852, %v622, %v868
        %v885 = vsel %vm853, %v627, %v869
        %v886 = vsel %vm854, %v632, %v870
        %v887 = vsel %vm855, %v637, %v871
        %v888 = vsel %vm856, %v642, %v872
        %v889 = vsel %vm857, %v647, %v873
        %v890 = vld [vmem:[%s3] sm:$0xff]
        %v891 = vld [vmem:[%s3 + $0x8] sm:$0xff]
        %v892 = vld [vmem:[%s3 + $0x10] sm:$0xff]
        %v893 = vld [vmem:[%s3 + $0x18] sm:$0xff]
        %v894 = vld [vmem:[%s3 + $0x20] sm:$0xff]
        %v895 = vld [vmem:[%s3 + $0x28] sm:$0xff]
        %v896 = vld [vmem:[%s3 + $0x30] sm:$0xff]
        %v897 = vld [vmem:[%s3 + $0x38] sm:$0xff]
        %v898 = vld [vmem:[%s4] sm:$0xff]
        %v899 = vld [vmem:[%s4 + $0x8] sm:$0xff]
        %v900 = vld [vmem:[%s4 + $0x10] sm:$0xff]
        %v901 = vld [vmem:[%s4 + $0x18] sm:$0xff]
        %v902 = vld [vmem:[%s4 + $0x20] sm:$0xff]
        %v903 = vld [vmem:[%s4 + $0x28] sm:$0xff]
        %v904 = vld [vmem:[%s4 + $0x30] sm:$0xff]
        %v905 = vld [vmem:[%s4 + $0x38] sm:$0xff]
        %907 = vset.pattern.permute.xlu0 0
        %908 = vperm.xlu0 %907, %v898
        %v909 = vpop.permute.xlu0 %908
        %912 = vset.pattern.permute.xlu0 0
        %913 = vperm.xlu0 %912, %v899
        %v914 = vpop.permute.xlu0 %913
        %917 = vset.pattern.permute.xlu0 0
        %918 = vperm.xlu0 %917, %v900
        %v919 = vpop.permute.xlu0 %918
        %922 = vset.pattern.permute.xlu0 0
        %923 = vperm.xlu0 %922, %v901
        %v924 = vpop.permute.xlu0 %923
        %927 = vset.pattern.permute.xlu0 0
        %928 = vperm.xlu0 %927, %v902
        %v929 = vpop.permute.xlu0 %928
        %932 = vset.pattern.permute.xlu0 0
        %933 = vperm.xlu0 %932, %v903
        %v934 = vpop.permute.xlu0 %933
        %937 = vset.pattern.permute.xlu0 0
        %938 = vperm.xlu0 %937, %v904
        %v939 = vpop.permute.xlu0 %938
        %942 = vset.pattern.permute.xlu0 0
        %943 = vperm.xlu0 %942, %v905
        %v944 = vpop.permute.xlu0 %943
        %946 = vmatprep.subr.mxu0 0.0
        %947 = vmatpush1.msra.mxu0 %v889
        %948 = vmatprep.subr.mxu0 0.0
        %949 = vmatpush1.msra.mxu0 %v888
        %950 = vmatprep.subr.mxu0 0.0
        %951 = vmatpush1.msra.mxu0 %v887
        %952 = vmatprep.subr.mxu0 0.0
        %953 = vmatpush1.msra.mxu0 %v886
        %954 = vmatprep.subr.mxu0 0.0
        %955 = vmatpush1.msra.mxu0 %v885
        %956 = vmatprep.subr.mxu0 0.0
        %957 = vmatpush1.msra.mxu0 %v884
        %958 = vmatprep.subr.mxu0 0.0
        %959 = vmatpush1.msra.mxu0 %v883
        %960 = vmatprep.subr.mxu0 0.0
        %961 = vmatpush1.msra.mxu0 %v882
        %962 = vmatprep.subr.mxu0 0.0
        %963 = vmatpush1.msra.mxu0 %v881
        %964 = vmatprep.subr.mxu0 0.0
        %965 = vmatpush1.msra.mxu0 %v880
        %966 = vmatprep.subr.mxu0 0.0
        %967 = vmatpush1.msra.mxu0 %v879
        %968 = vmatprep.subr.mxu0 0.0
        %969 = vmatpush1.msra.mxu0 %v878
        %970 = vmatprep.subr.mxu0 0.0
        %971 = vmatpush1.msra.mxu0 %v877
        %972 = vmatprep.subr.mxu0 0.0
        %973 = vmatpush1.msra.mxu0 %v876
        %974 = vmatprep.subr.mxu0 0.0
        %975 = vmatpush1.msra.mxu0 %v875
        %976 = vmatprep.subr.mxu0 0.0
        %977 = vmatpush1.msra.mxu0 %v874
        %978 = vmatprep.subr.mxu0 0.0
        %979 = vmatpush2.msra.mxu0 0.0
        %980 = vmatprep.subr.mxu0 0.0
        %981 = vmatpush2.msra.mxu0 0.0
        %982 = vmatprep.subr.mxu0 0.0
        %983 = vmatpush2.msra.mxu0 0.0
        %984 = vmatprep.subr.mxu0 0.0
        %985 = vmatpush2.msra.mxu0 0.0
        %986 = vmatprep.subr.mxu0 0.0
        %987 = vmatpush2.msra.mxu0 0.0
        %988 = vmatprep.subr.mxu0 0.0
        %989 = vmatpush2.msra.mxu0 0.0
        %990 = vmatprep.subr.mxu0 0.0
        %991 = vmatpush2.msra.mxu0 0.0
        %992 = vmatprep.subr.mxu0 0.0
        %993 = vmatpush2.msra.mxu0 0.0
        %994 = vmatprep.subr.mxu0 0.0
        %995 = vmatpush2.msra.mxu0 0.0
        %996 = vmatprep.subr.mxu0 0.0
        %997 = vmatpush2.msra.mxu0 0.0
        %998 = vmatprep.subr.mxu0 0.0
        %999 = vmatpush2.msra.mxu0 0.0
        %1000 = vmatprep.subr.mxu0 0.0
        %1001 = vmatpush2.msra.mxu0 0.0
        %1002 = vmatprep.subr.mxu0 0.0
        %1003 = vmatpush2.msra.mxu0 0.0
        %1004 = vmatprep.subr.mxu0 0.0
        %1005 = vmatpush2.msra.mxu0 0.0
        %1006 = vmatprep.subr.mxu0 0.0
        %1007 = vmatpush2.msra.mxu0 0.0
        %1008 = vmatprep.subr.mxu0 0.0
        %1009 = vmatpush2.msra.mxu0 0.0
        %1010 = vmatprep.mubr.f32.mxu0 0.0
        %1011 = vmatmul.mubr.f32.gmra.mxu0 %v890
        %v1012 = vpop.f32.mrf.mxu0
        %v1013 = vadd.f32 %v909, %v1012
        %v1014 = vpop.f32.mrf.mxu0
        %1015 = vmatprep.mubr.f32.mxu0 0.0
        %1016 = vmatmul.mubr.f32.gmra.mxu0 %v891
        %v1017 = vpop.f32.mrf.mxu0
        %v1018 = vadd.f32 %v914, %v1017
        %v1019 = vpop.f32.mrf.mxu0
        %1020 = vmatprep.mubr.f32.mxu0 0.0
        %1021 = vmatmul.mubr.f32.gmra.mxu0 %v892
        %v1022 = vpop.f32.mrf.mxu0
        %v1023 = vadd.f32 %v919, %v1022
        %v1024 = vpop.f32.mrf.mxu0
        %1025 = vmatprep.mubr.f32.mxu0 0.0
        %1026 = vmatmul.mubr.f32.gmra.mxu0 %v893
        %v1027 = vpop.f32.mrf.mxu0
        %v1028 = vadd.f32 %v924, %v1027
        %v1029 = vpop.f32.mrf.mxu0
        %1030 = vmatprep.mubr.f32.mxu0 0.0
        %1031 = vmatmul.mubr.f32.gmra.mxu0 %v894
        %v1032 = vpop.f32.mrf.mxu0
        %v1033 = vadd.f32 %v929, %v1032
        %v1034 = vpop.f32.mrf.mxu0
        %1035 = vmatprep.mubr.f32.mxu0 0.0
        %1036 = vmatmul.mubr.f32.gmra.mxu0 %v895
        %v1037 = vpop.f32.mrf.mxu0
        %v1038 = vadd.f32 %v934, %v1037
        %v1039 = vpop.f32.mrf.mxu0
        %1040 = vmatprep.mubr.f32.mxu0 0.0
        %1041 = vmatmul.mubr.f32.gmra.mxu0 %v896
        %v1042 = vpop.f32.mrf.mxu0
        %v1043 = vadd.f32 %v939, %v1042
        %v1044 = vpop.f32.mrf.mxu0
        %1045 = vmatprep.mubr.f32.mxu0 0.0
        %1046 = vmatmul.mubr.f32.gmra.mxu0 %v897
        %v1047 = vpop.f32.mrf.mxu0
        %v1048 = vadd.f32 %v944, %v1047
        %v1049 = vpop.f32.mrf.mxu0
        %1050 = vdwg.mxu0
        %v1051 = vmin.f32 %v1013, 0.0
        %v1052 = vmin.f32 %v1018, 0.0
        %v1053 = vmin.f32 %v1023, 0.0
        %v1054 = vmin.f32 %v1028, 0.0
        %v1055 = vmin.f32 %v1033, 0.0
        %v1056 = vmin.f32 %v1038, 0.0
        %v1057 = vmin.f32 %v1043, 0.0
        %v1058 = vmin.f32 %v1048, 0.0
        %v1059 = vmul.f32 %v1051, 10.0
        %v1060 = vmul.f32 %v1052, 10.0
        %v1061 = vmul.f32 %v1053, 10.0
        %v1062 = vmul.f32 %v1054, 10.0
        %v1063 = vmul.f32 %v1055, 10.0
        %v1064 = vmul.f32 %v1056, 10.0
        %v1065 = vmul.f32 %v1057, 10.0
        %v1066 = vmul.f32 %v1058, 10.0
        %v1067 = vmul.f32 %v1059, 1.442695
        %v1068 = vpow.pop %v1067
        %v1069 = vmul.f32 %v1060, 1.442695
        %v1070 = vpow.pop %v1069
        %v1071 = vmul.f32 %v1061, 1.442695
        %v1072 = vpow.pop %v1071
        %v1073 = vmul.f32 %v1062, 1.442695
        %v1074 = vpow.pop %v1073
        %v1075 = vmul.f32 %v1063, 1.442695
        %v1076 = vpow.pop %v1075
        %v1077 = vmul.f32 %v1064, 1.442695
        %v1078 = vpow.pop %v1077
        %v1079 = vmul.f32 %v1065, 1.442695
        %v1080 = vpow.pop %v1079
        %v1081 = vmul.f32 %v1066, 1.442695
        %v1082 = vpow.pop %v1081
        %v1083 = vsub.f32 %v1068, 1.0
        %v1084 = vsub.f32 %v1070, 1.0
        %v1085 = vsub.f32 %v1072, 1.0
        %v1086 = vsub.f32 %v1074, 1.0
        %v1087 = vsub.f32 %v1076, 1.0
        %v1088 = vsub.f32 %v1078, 1.0
        %v1089 = vsub.f32 %v1080, 1.0
        %v1090 = vsub.f32 %v1082, 1.0
        %v1091 = vmul.f32 %v1059, 0.16666667
        %v1092 = vmul.f32 %v1060, 0.16666667
        %v1093 = vmul.f32 %v1061, 0.16666667
        %v1094 = vmul.f32 %v1062, 0.16666667
        %v1095 = vmul.f32 %v1063, 0.16666667
        %v1096 = vmul.f32 %v1064, 0.16666667
        %v1097 = vmul.f32 %v1065, 0.16666667
        %v1098 = vmul.f32 %v1066, 0.16666667
        %v1099 = vadd.f32 %v1091, 0.5
        %v1100 = vadd.f32 %v1092, 0.5
        %v1101 = vadd.f32 %v1093, 0.5
        %v1102 = vadd.f32 %v1094, 0.5
        %v1103 = vadd.f32 %v1095, 0.5
        %v1104 = vadd.f32 %v1096, 0.5
        %v1105 = vadd.f32 %v1097, 0.5
        %v1106 = vadd.f32 %v1098, 0.5
        %v1107 = vmul.f32 %v1059, %v1099
        %v1108 = vmul.f32 %v1060, %v1100
        %v1109 = vmul.f32 %v1061, %v1101
        %v1110 = vmul.f32 %v1062, %v1102
        %v1111 = vmul.f32 %v1063, %v1103
        %v1112 = vmul.f32 %v1064, %v1104
        %v1113 = vmul.f32 %v1065, %v1105
        %v1114 = vmul.f32 %v1066, %v1106
        %v1115 = vadd.f32 %v1107, 1.0
        %v1116 = vadd.f32 %v1108, 1.0
        %v1117 = vadd.f32 %v1109, 1.0
        %v1118 = vadd.f32 %v1110, 1.0
        %v1119 = vadd.f32 %v1111, 1.0
        %v1120 = vadd.f32 %v1112, 1.0
        %v1121 = vadd.f32 %v1113, 1.0
        %v1122 = vadd.f32 %v1114, 1.0
        %v1123 = vmul.f32 %v1059, %v1115
        %v1124 = vmul.f32 %v1060, %v1116
        %v1125 = vmul.f32 %v1061, %v1117
        %v1126 = vmul.f32 %v1062, %v1118
        %v1127 = vmul.f32 %v1063, %v1119
        %v1128 = vmul.f32 %v1064, %v1120
        %v1129 = vmul.f32 %v1065, %v1121
        %v1130 = vmul.f32 %v1066, %v1122
        %vm1131 = vcmp.gt.f32.partialorder %v1059, -0.04
        %vm1132 = vcmp.gt.f32.partialorder %v1060, -0.04
        %vm1133 = vcmp.gt.f32.partialorder %v1061, -0.04
        %vm1134 = vcmp.gt.f32.partialorder %v1062, -0.04
        %vm1135 = vcmp.gt.f32.partialorder %v1063, -0.04
        %vm1136 = vcmp.gt.f32.partialorder %v1064, -0.04
        %vm1137 = vcmp.gt.f32.partialorder %v1065, -0.04
        %vm1138 = vcmp.gt.f32.partialorder %v1066, -0.04
        %v1139 = vsel %vm1131, %v1123, %v1083
        %v1140 = vsel %vm1132, %v1124, %v1084
        %v1141 = vsel %vm1133, %v1125, %v1085
        %v1142 = vsel %vm1134, %v1126, %v1086
        %v1143 = vsel %vm1135, %v1127, %v1087
        %v1144 = vsel %vm1136, %v1128, %v1088
        %v1145 = vsel %vm1137, %v1129, %v1089
        %v1146 = vsel %vm1138, %v1130, %v1090
        %vm1147 = vcmp.gt.f32.partialorder %v1013, 0.0
        %vm1148 = vcmp.gt.f32.partialorder %v1018, 0.0
        %vm1149 = vcmp.gt.f32.partialorder %v1023, 0.0
        %vm1150 = vcmp.gt.f32.partialorder %v1028, 0.0
        %vm1151 = vcmp.gt.f32.partialorder %v1033, 0.0
        %vm1152 = vcmp.gt.f32.partialorder %v1038, 0.0
        %vm1153 = vcmp.gt.f32.partialorder %v1043, 0.0
        %vm1154 = vcmp.gt.f32.partialorder %v1048, 0.0
        %v1155 = vmul.f32 %v1139, 0.1
        %v1156 = vmul.f32 %v1140, 0.1
        %v1157 = vmul.f32 %v1141, 0.1
        %v1158 = vmul.f32 %v1142, 0.1
        %v1159 = vmul.f32 %v1143, 0.1
        %v1160 = vmul.f32 %v1144, 0.1
        %v1161 = vmul.f32 %v1145, 0.1
        %v1162 = vmul.f32 %v1146, 0.1
        %v1163 = vsel %vm1147, %v1013, %v1155
        %v1164 = vsel %vm1148, %v1018, %v1156
        %v1165 = vsel %vm1149, %v1023, %v1157
        %v1166 = vsel %vm1150, %v1028, %v1158
        %v1167 = vsel %vm1151, %v1033, %v1159
        %v1168 = vsel %vm1152, %v1038, %v1160
        %v1169 = vsel %vm1153, %v1043, %v1161
        %v1170 = vsel %vm1154, %v1048, %v1162
        %v1171 = vld [vmem:[%s5] sm:$0x1]
        %v1172 = vld [vmem:[#allocation2] sm:$0x1]
        %1174 = vset.pattern.permute.xlu0 0
        %1175 = vperm.xlu0 %1174, %v1172
        %v1176 = vpop.permute.xlu0 %1175
        %v1178 = vlaneseq
        %v1179 = vshrl.u32 %v1178, 7
        %v1180 = vsub.s32 0, %v1179
        %v1181 = vrot.slane %v1176, %v1180
        %vm1182 = vcmask 523264
        %v1184 = vsel %vm1182, %v1171, 0
        %1186 = vmatprep.subr.mxu0 0.0
        %1187 = vmatpush1.msra.mxu0 0.0
        %1188 = vmatprep.subr.mxu0 0.0
        %1189 = vmatpush1.msra.mxu0 0.0
        %1190 = vmatprep.subr.mxu0 0.0
        %1191 = vmatpush1.msra.mxu0 0.0
        %1192 = vmatprep.subr.mxu0 0.0
        %1193 = vmatpush1.msra.mxu0 0.0
        %1194 = vmatprep.subr.mxu0 0.0
        %1195 = vmatpush1.msra.mxu0 0.0
        %1196 = vmatprep.subr.mxu0 0.0
        %1197 = vmatpush1.msra.mxu0 0.0
        %1198 = vmatprep.subr.mxu0 0.0
        %1199 = vmatpush1.msra.mxu0 0.0
        %1200 = vmatprep.subr.mxu0 0.0
        %1201 = vmatpush1.msra.mxu0 0.0
        %1202 = vmatprep.subr.mxu0 0.0
        %1203 = vmatpush1.msra.mxu0 %v1170
        %1204 = vmatprep.subr.mxu0 0.0
        %1205 = vmatpush1.msra.mxu0 %v1169
        %1206 = vmatprep.subr.mxu0 0.0
        %1207 = vmatpush1.msra.mxu0 %v1168
        %1208 = vmatprep.subr.mxu0 0.0
        %1209 = vmatpush1.msra.mxu0 %v1167
        %1210 = vmatprep.subr.mxu0 0.0
        %1211 = vmatpush1.msra.mxu0 %v1166
        %1212 = vmatprep.subr.mxu0 0.0
        %1213 = vmatpush1.msra.mxu0 %v1165
        %1214 = vmatprep.subr.mxu0 0.0
        %1215 = vmatpush1.msra.mxu0 %v1164
        %1216 = vmatprep.subr.mxu0 0.0
        %1217 = vmatpush1.msra.mxu0 %v1163
        %1218 = vmatprep.subr.mxu0 0.0
        %1219 = vmatpush2.msra.mxu0 0.0
        %1220 = vmatprep.subr.mxu0 0.0
        %1221 = vmatpush2.msra.mxu0 0.0
        %1222 = vmatprep.subr.mxu0 0.0
        %1223 = vmatpush2.msra.mxu0 0.0
        %1224 = vmatprep.subr.mxu0 0.0
        %1225 = vmatpush2.msra.mxu0 0.0
        %1226 = vmatprep.subr.mxu0 0.0
        %1227 = vmatpush2.msra.mxu0 0.0
        %1228 = vmatprep.subr.mxu0 0.0
        %1229 = vmatpush2.msra.mxu0 0.0
        %1230 = vmatprep.subr.mxu0 0.0
        %1231 = vmatpush2.msra.mxu0 0.0
        %1232 = vmatprep.subr.mxu0 0.0
        %1233 = vmatpush2.msra.mxu0 0.0
        %1234 = vmatprep.subr.mxu0 0.0
        %1235 = vmatpush2.msra.mxu0 0.0
        %1236 = vmatprep.subr.mxu0 0.0
        %1237 = vmatpush2.msra.mxu0 0.0
        %1238 = vmatprep.subr.mxu0 0.0
        %1239 = vmatpush2.msra.mxu0 0.0
        %1240 = vmatprep.subr.mxu0 0.0
        %1241 = vmatpush2.msra.mxu0 0.0
        %1242 = vmatprep.subr.mxu0 0.0
        %1243 = vmatpush2.msra.mxu0 0.0
        %1244 = vmatprep.subr.mxu0 0.0
        %1245 = vmatpush2.msra.mxu0 0.0
        %1246 = vmatprep.subr.mxu0 0.0
        %1247 = vmatpush2.msra.mxu0 0.0
        %1248 = vmatprep.subr.mxu0 0.0
        %1249 = vmatpush2.msra.mxu0 0.0
        %1250 = vmatprep.mubr.f32.mxu0 0.0
        %1251 = vmatmul.mubr.f32.gmra.mxu0 %v1184
        %v1252 = vpop.f32.mrf.mxu0
        %v1253 = vadd.f32 %v1181, %v1252
        %v1254 = vpop.f32.mrf.mxu0
        %1255 = vdwg.mxu0
        %1256 = vst [vmem:[%s273] sm:$0x1] %v1253
        %s1257 = sand.u32 %s183, 1
        %s1258 = scalar_lea.sflag [#allocation4], %s1257
        %s1259 = sand.u32 %s183, 1
        %s1260 = scalar_lea.vmem [#allocation3], %s1259
        // Predicated region
        $region49: #{tpu_custom_call.1} parent=47 // pred_check
          %p1261 = pneg %p193
        $region50: #{tpu_custom_call.1} parent=47 // pred_check_branch
          %1263 = sbr.rel (%p1261) target = $region52
        $region51: #{tpu_custom_call.1} parent=47 // pred_region
          %s1265 = ssub.s32 16, 16
          %1266 = vsyncadd %s1258, %s1265
          %s1267 = smul.addr %s23, 16
          %s1268 = scalar_lea.hbm %s7, %s1267
          %s1270 = sshll.u32 %s1260, 4
          %s1271 = int_to_ptr.vmem [resolvable:$true] %s1270
          %1273 = dma.vmem_to_hbm [thread:$0]  %s1271, 16, %s1268, %s1258
        $region52: #{tpu_custom_call.1} parent=47 // pred_fallthru
          _
      $region48: #{tpu_custom_call.1} parent=5 // pred_fallthru
        _
      %p1274 = scmp.le.s32.totalorder 2, %s18
      // Predicated region
      $region53: #{tpu_custom_call.1} parent=5 // pred_check
        %p1275 = pneg %p1274
      $region54: #{tpu_custom_call.1} parent=5 // pred_check_branch
        %1277 = sbr.rel (%p1275) target = $region56
      $region55: #{tpu_custom_call.1} parent=5 // pred_region
        %s1278 = ssub.s32 %s18, 2
        // Predicated region
        $region57: #{tpu_custom_call.1} parent=55 // pred_check
          %p1279 = pneg %p199
        $region58: #{tpu_custom_call.1} parent=55 // pred_check_branch
          %1281 = sbr.rel (%p1279) target = $region60
        $region59: #{tpu_custom_call.1} parent=55 // pred_region
          %s1282 = sand.u32 %s184, 1
          %s1283 = scalar_lea.sflag [#allocation4], %s1282
          %s1284 = sand.u32 %s184, 1
          %s1285 = scalar_lea.vmem [#allocation3], %s1284
          %1286 = dma.done %s1283, 16
        $region60: #{tpu_custom_call.1} parent=55 // pred_fallthru
          _
      $region56: #{tpu_custom_call.1} parent=5 // pred_fallthru
        _
    $region6: #{tpu_custom_call.1} parent=1 // loop_footer
      %s22 = sadd.s32 1, %s18
    $region7: #{tpu_custom_call.1} parent=1 // loop_footer_branch
      %17 = sbr.rel target = $region3
    $region8: #{tpu_custom_call.1} parent=1 // loop_exit
      _
    %1287 = vsyncpa [#allocation4], 1
    %s1288 = scalar_lea.sflag [#allocation4], 1
    %1289 = vsyncpa %s1288, 1

</llo_original>
